<compile_context>
chip_gen: v7x
topology: tpu7x:2x2x1
jax: 0.10.0
libtpu: 0.0.40
codegen_flags: <defaults>
</compile_context>

<pallas_src>
import jax
import jax.numpy as jnp
from jax.experimental import pallas as pl
from jax.experimental.pallas import tpu as pltpu

# ----------------------------- configuration --------------------------------
B = 2              # batch
C = 3              # img_channels
H = W = 16         # input_size (W must be a power of two for the in-kernel grid)
HW = H * W         # 256 -> TPU lane axis
O = 4              # num_objects
G = 32             # gestalt_size
PDIM = 3           # (x, y, std) per object
HID = 32           # stand-in hidden width
F_DEC = (1 + C) * HW            # fused decoder features: [mask feature | rgb appearance]
F_ENC = C + C + 1 + PDIM + 1    # pooled-rgb + pooled-object + err + pos + prio = 11
ZDIM = PDIM + G + 1             # fused (pos | gestalt | priority) head width = 36


# ============================ Pallas kernel ==================================

def _lane_grid():
    """Pixel coordinate grids along the lane axis, equal to
    meshgrid(linspace(-1,1,H), linspace(-1,1,W), indexing='ij') flattened to HW."""
    idx = jax.lax.broadcasted_iota(jnp.int32, (1, HW), 1)
    row = (idx >> (W.bit_length() - 1)).astype(jnp.float32)
    col = (idx & (W - 1)).astype(jnp.float32)
    gx = col * (2.0 / (W - 1)) - 1.0
    gy = row * (2.0 / (H - 1)) - 1.0
    return gx, gy


def _loci_frame_kernel(x_ref, bg_ref, bgm_ref, ig_ref, ipp_ref, decw_ref,
                       encw1_ref, encwo_ref, predw1_ref, predwo_ref,
                       out_ref, mobj_ref, mbg_ref, obj_ref,
                       pos_ref, ges_ref, pri_ref, sn_ref):
    """One batch element per grid step: error -> initial latent states ->
    decoder #1 -> initial mask softmax -> encoder -> predictor -> decoder #2 ->
    final mask softmax -> sigmoid(obj-2.5) -> weighted composite.
    All intermediates stay in VMEM / vregs."""
    x = x_ref[...]                                        # (C, HW)
    bg = bg_ref[...]                                      # (C, HW)
    bgm = bgm_ref[...]                                    # (1, HW)  background mask logit
    w_dec = decw_ref[...]                                 # (G, F_DEC) bf16

    # ---- error = sqrt(mean_c (x - bg)^2)  (forward-only, "detached") --------
    d = x - bg
    err = jnp.sqrt(jnp.mean(d * d, axis=0, keepdims=True))        # (1, HW)
    e_mean = jnp.mean(err, axis=1, keepdims=True)                  # (1, 1)

    # ---- InitialLatentStates stand-in ---------------------------------------
    # TODO(synk): real InitialLatentStates definition unavailable.
    gestalt0 = jax.nn.sigmoid(ig_ref[...] + e_mean)                # (O, G)
    pos_pri = ipp_ref[...]                                         # (O, 4) = [x, y, std, prio]
    scale = 1.0 + 0.1 * jnp.tanh(e_mean)                           # (1, 1)
    pos0 = pos_pri[:, 0:PDIM] * scale                              # (O, 3)
    pri0 = pos_pri[:, PDIM:PDIM + 1]                               # (O, 1)

    # ---- decoder call #1: initial mask feature + object_last appearance -----
    dec0 = jnp.dot(gestalt0.astype(jnp.bfloat16), w_dec,
                   preferred_element_type=jnp.float32)             # (O, F_DEC)
    # raw (pre-sigmoid) appearance == decoder(position_last, gestalt)[-1]
    obj_last = dec0[:, HW:]                                        # (O, C*HW)

    gx, gy = _lane_grid()                                          # (1, HW) each

    def _mask_softmax(pos, pri, feat):
        """Gaussian position logits + 0.1*decoder feature + priority, softmaxed
        jointly with the background logit.  Exact reciprocal (masks sum to 1)."""
        px, py, std = pos[:, 0:1], pos[:, 1:2], pos[:, 2:3]
        d2 = (gx - px) ** 2 + (gy - py) ** 2                       # (O, HW)
        logit = -d2 / (2.0 * std * std + 1e-4) + 0.1 * feat + pri  # (O, HW)
        m = jnp.maximum(jnp.max(logit, axis=0, keepdims=True), bgm)
        e_obj = jnp.exp(logit - m)                                 # (O, HW)
        e_bg = jnp.exp(bgm - m)                                    # (1, HW)
        inv = 1.0 / (jnp.sum(e_obj, axis=0, keepdims=True) + e_bg) # exact
        return e_obj * inv, e_bg * inv

    mask0_obj, _ = _mask_softmax(pos0, pri0, dec0[:, :HW])         # (O, HW)

    # ---- LociEncoder stand-in (mask-pooled features -> latent update) -------
    # TODO(synk): LociEncoder conv pyramid unavailable; mask-pooled MLP stand-in.
    msum = jnp.sum(mask0_obj, axis=1, keepdims=True) + 1e-6        # (O, 1)
    feat_in = jax.lax.dot_general(                                  # (O, C): sum_hw mask*x
        mask0_obj, x, (((1,), (1,)), ((), ())),
        preferred_element_type=jnp.float32) / msum
    feat_obj = jnp.concatenate(                                     # (O, C): mean_hw obj_last
        [jnp.mean(obj_last[:, c * HW:(c + 1) * HW], axis=1, keepdims=True)
         for c in range(C)], axis=1)
    feat_err = jnp.sum(mask0_obj * err, axis=1, keepdims=True) / msum   # (O, 1)
    feat = jnp.concatenate([feat_in, feat_obj, feat_err, pos0, pri0],
                           axis=1)                                  # (O, F_ENC)
    h = jnp.tanh(jnp.dot(feat, encw1_ref[...],
                         preferred_element_type=jnp.float32))       # (O, HID)
    eo = jnp.dot(h, encwo_ref[...], preferred_element_type=jnp.float32)  # (O, ZDIM)
    pos1 = pos0 + 0.1 * jnp.tanh(eo[:, 0:PDIM])
    ges1 = jax.nn.sigmoid(eo[:, PDIM:PDIM + G])
    pri1 = pri0 + 0.1 * eo[:, PDIM + G:PDIM + G + 1]

    # ---- LociPredictor stand-in ----------------------------------------------
    # TODO(synk): LociPredictor attention layers unavailable; MLP stand-in.
    z = jnp.concatenate([pos1, ges1, pri1], axis=1)                 # (O, ZDIM)
    h2 = jnp.tanh(jnp.dot(z, predw1_ref[...],
                          preferred_element_type=jnp.float32))      # (O, HID)
    po = jnp.dot(h2, predwo_ref[...], preferred_element_type=jnp.float32)  # (O, ZDIM)
    pos2 = pos1 + 0.1 * jnp.tanh(po[:, 0:PDIM])
    ges2 = jax.nn.sigmoid(ges1 + po[:, PDIM:PDIM + G])
    pri2 = pri1 + 0.1 * po[:, PDIM + G:PDIM + G + 1]
    snitch = jnp.mean(pos2, axis=0, keepdims=True)                  # (1, PDIM)

    # ---- Loci.run_decoder: decode -> softmax -> sigmoid -> composite --------
    dec1 = jnp.dot(ges2.astype(jnp.bfloat16), w_dec,
                   preferred_element_type=jnp.float32)              # (O, F_DEC)
    obj_sig = jax.nn.sigmoid(dec1[:, HW:] - 2.5)                    # (O, C*HW)
    mask_obj, mask_bg = _mask_softmax(pos2, pri2, dec1[:, :HW])     # (O,HW), (1,HW)

    # output = sum_k mask_k * object_k  (per-channel lane slices: multiples of
    # 128, no sublane-partial per-object slices)
    out = jnp.concatenate(
        [jnp.sum(mask_obj * obj_sig[:, c * HW:(c + 1) * HW],
                 axis=0, keepdims=True) for c in range(C)],
        axis=0) + mask_bg * bg                                      # (C, HW)

    # ---- single full, lane-dense stores --------------------------------------
    out_ref[...] = out
    mobj_ref[...] = mask_obj
    mbg_ref[...] = mask_bg
    obj_ref[...] = obj_sig
    pos_ref[...] = pos2
    ges_ref[...] = ges2
    pri_ref[...] = pri2
    sn_ref[...] = snitch


# ----------------------------- kernel wrapper --------------------------------

def _batch_block(rows, lanes):
    # per-batch block; leading (batch) dim squeezed out of the kernel Ref
    return pl.BlockSpec((None, rows, lanes), lambda b: (b, 0, 0))


def _shared3_block(rows, lanes):
    # batch-invariant 3-D input (background / bg mask), block index fixed at 0
    return pl.BlockSpec((None, rows, lanes), lambda b: (0, 0, 0))


def _shared2_block(shape):
    # whole weight / parameter array, resident across all grid steps
    return pl.BlockSpec(shape, lambda b: (0, 0))


def fused_loci_frame(params, x3):
    """The entire Loci frame (error + initial states + both decoder calls +
    encoder + predictor + composite) as one pallas_call, grid=(B,) parallel."""
    return pl.pallas_call(
        _loci_frame_kernel,
        out_shape=(
            jax.ShapeDtypeStruct((B, C, HW), jnp.float32),       # composite output
            jax.ShapeDtypeStruct((B, O, HW), jnp.float32),       # softmax mask (objects)
            jax.ShapeDtypeStruct((B, 1, HW), jnp.float32),       # softmax mask (background)
            jax.ShapeDtypeStruct((B, O, C * HW), jnp.float32),   # sigmoid(obj - 2.5)
            jax.ShapeDtypeStruct((B, O, PDIM), jnp.float32),     # position
            jax.ShapeDtypeStruct((B, O, G), jnp.float32),        # gestalt
            jax.ShapeDtypeStruct((B, O, 1), jnp.float32),        # priority
            jax.ShapeDtypeStruct((B, 1, PDIM), jnp.float32),     # snitch position
        ),
        grid=(B,),
        in_specs=[
            _batch_block(C, HW),                    # x
            _shared3_block(C, HW),                  # background (batch-invariant param)
            _shared3_block(1, HW),                  # bg mask logit
            _shared2_block((O, G)),                 # init gestalt logits
            _shared2_block((O, PDIM + 1)),          # init [x, y, std, priority]
            _shared2_block((G, F_DEC)),             # fused decoder weight (bf16)
            _shared2_block((F_ENC, HID)),           # encoder w1
            _shared2_block((HID, ZDIM)),            # encoder fused output head
            _shared2_block((ZDIM, HID)),            # predictor w1
            _shared2_block((HID, ZDIM)),            # predictor fused output head
        ],
        out_specs=(
            _batch_block(C, HW),
            _batch_block(O, HW),
            _batch_block(1, HW),
            _batch_block(O, C * HW),
            _batch_block(O, PDIM),
            _batch_block(O, G),
            _batch_block(O, 1),
            _batch_block(1, PDIM),
        ),
        compiler_params=pltpu.CompilerParams(
            dimension_semantics=("parallel",)),     # v7x: one batch per TensorCore
    )(x3,
      params["background"].reshape(1, C, HW),
      params["bg_mask"].reshape(1, 1, HW),
      params["init_gestalt"],
      params["init_pos_pri"],
      params["dec_w"],
      params["enc_w1"], params["enc_wout"],
      params["pred_w1"], params["pred_wout"])


# ======================= deterministic parameter setup =======================

def init_params(key):
    ks = jax.random.split(key, 10)
    p = {}
    # TODO(synk): BackgroundEnhancer conv stack unavailable; learned static
    # background + bg-mask logit stand-in.
    p["bg_mask"] = 0.1 * jax.random.normal(ks[0], (1, 1, H, W), jnp.float32)
    p["background"] = jax.nn.sigmoid(jax.random.normal(ks[1], (1, C, H, W), jnp.float32))
    # TODO(synk): InitialLatentStates definition unavailable; quadrant init stand-in.
    quad = jnp.array([[-0.5, -0.5, 0.4],
                      [0.5, -0.5, 0.4],
                      [-0.5, 0.5, 0.4],
                      [0.5, 0.5, 0.4]], jnp.float32)               # (O, PDIM)
    prio = 0.1 * jnp.arange(O, dtype=jnp.float32)[:, None]          # (O, 1)
    p["init_pos_pri"] = jnp.concatenate([quad, prio], axis=1)       # (O, PDIM+1)
    p["init_gestalt"] = 0.5 * jax.random.normal(ks[2], (O, G), jnp.float32)
    # fused decoder weight (gestalt -> [mask feature | rgb appearance]); bf16 for
    # the MXU (f32 accumulate).  Columns [0, HW) = mask feature, HW + c*HW + p =
    # appearance channel c, pixel p (matches the free (O, C*HW) -> (O*C, H, W)
    # reshape / PyTorch object.view channel order).
    w_mask = 0.05 * jax.random.normal(ks[3], (G, HW), jnp.float32)
    w_obj = 0.05 * jax.random.normal(ks[4], (G, C * HW), jnp.float32)
    p["dec_w"] = jnp.concatenate([w_mask, w_obj], axis=1).astype(jnp.bfloat16)
    # encoder stand-in (TODO(synk): LociEncoder conv pyramid unavailable)
    p["enc_w1"] = 0.1 * jax.random.normal(ks[5], (F_ENC, HID), jnp.float32)
    p["enc_wout"] = 0.1 * jax.random.normal(ks[6], (HID, ZDIM), jnp.float32)
    # predictor stand-in (TODO(synk): LociPredictor attention layers unavailable)
    p["pred_w1"] = 0.1 * jax.random.normal(ks[7], (ZDIM, HID), jnp.float32)
    p["pred_wout"] = 0.1 * jax.random.normal(ks[8], (HID, ZDIM), jnp.float32)
    return p


# =============================== end-to-end ==================================

def loci_forward(params, x):
    """Mirrors Loci.run_end2end(input) with error/mask/position/... = None."""
    Bc = x.shape[0]
    background = jnp.broadcast_to(params["background"], (Bc, C, H, W))
    raw_background = background

    (out3, mobj3, mbg3, obj3, pos3, ges3, pri3, sn3) = fused_loci_frame(
        params, x.reshape(Bc, C, HW))

    output = out3.reshape(Bc, C, H, W)
    # mask = softmax(cat(object masks, bg mask)) with (objects..., background) order
    mask = jnp.concatenate([mobj3, mbg3], axis=1).reshape(Bc, O + 1, H, W)
    # object = cat(sigmoid(obj - 2.5), background) channel order (objects*C, C)
    object_ = jnp.concatenate([obj3.reshape(Bc, O * C, H, W), background], axis=1)
    position = pos3.reshape(Bc, O * PDIM)
    gestalt = ges3.reshape(Bc, O * G)
    priority = pri3.reshape(Bc, O)
    snitch_position = sn3.reshape(Bc, PDIM)

    # TODO(synk): PositionLoss / MaskModulatedObjectLoss /
    # TranslationInvariantObjectLoss / ObjectModulator definitions are not in the
    # reference file; the training losses are reported as zeros.
    position_loss = jnp.zeros((), jnp.float32)
    object_loss = jnp.zeros((), jnp.float32)
    time_loss = jnp.zeros((), jnp.float32)

    return (output, position, gestalt, priority, mask, object_, raw_background,
            position_loss, object_loss, time_loss, snitch_position)


# ================================== main =====================================

if __name__ == "__main__":
    params = init_params(jax.random.PRNGKey(42))
    x = jax.random.uniform(jax.random.PRNGKey(0), (B, C, H, W), jnp.float32)

    outs = jax.jit(loci_forward)(params, x)
    outs = jax.block_until_ready(outs)

    (output, position, gestalt, priority, mask, object_, raw_background,
     position_loss, object_loss, time_loss, snitch_position) = outs

    assert output.shape == (B, C, H, W)
    assert mask.shape == (B, O + 1, H, W)
    assert object_.shape == (B, (O + 1) * C, H, W)
    assert position.shape == (B, O * PDIM)
    assert gestalt.shape == (B, O * G)
    assert priority.shape == (B, O)
    assert snitch_position.shape == (B, PDIM)
    # mask is a softmax with an exact reciprocal -> sums to 1 over the
    # object+background axis to f32 rounding
    assert jnp.allclose(jnp.sum(mask, axis=1), 1.0, atol=1e-4)
    assert jnp.all(jnp.isfinite(output))

    print("KERNEL_OK")
</pallas_src>

<mosaic_0001>
module attributes {stable_mosaic.version = 11 : i64} {
  func.func @_loci_frame_kernel(%arg0: i32, %arg1: memref<1x3x256xf32, #tpu.memory_space<vmem>>, %arg2: memref<1x3x256xf32, #tpu.memory_space<vmem>>, %arg3: memref<1x1x256xf32, #tpu.memory_space<vmem>>, %arg4: memref<4x32xf32, #tpu.memory_space<vmem>>, %arg5: memref<4x4xf32, #tpu.memory_space<vmem>>, %arg6: memref<32x1024xbf16, #tpu.memory_space<vmem>>, %arg7: memref<11x32xf32, #tpu.memory_space<vmem>>, %arg8: memref<32x36xf32, #tpu.memory_space<vmem>>, %arg9: memref<36x32xf32, #tpu.memory_space<vmem>>, %arg10: memref<32x36xf32, #tpu.memory_space<vmem>>, %arg11: memref<1x3x256xf32, #tpu.memory_space<vmem>>, %arg12: memref<1x4x256xf32, #tpu.memory_space<vmem>>, %arg13: memref<1x1x256xf32, #tpu.memory_space<vmem>>, %arg14: memref<1x4x768xf32, #tpu.memory_space<vmem>>, %arg15: memref<1x4x3xf32, #tpu.memory_space<vmem>>, %arg16: memref<1x4x32xf32, #tpu.memory_space<vmem>>, %arg17: memref<1x4x1xf32, #tpu.memory_space<vmem>>, %arg18: memref<1x1x3xf32, #tpu.memory_space<vmem>>) attributes {dimension_semantics = [#tpu.dimension_semantics<parallel>], iteration_bounds = array<i64: 2>, scalar_prefetch = 0 : i64, scratch_operands = 0 : i64, tpu.core_type = #tpu.core_type<tc>, window_params = [{transform_indices = @transform_0, window_bounds = array<i64: 1, 3, 256>}, {pipeline_mode = #tpu.pipeline_mode<synchronous>, transform_indices = @transform_1, window_bounds = array<i64: 1, 3, 256>}, {pipeline_mode = #tpu.pipeline_mode<synchronous>, transform_indices = @transform_2, window_bounds = array<i64: 1, 1, 256>}, {pipeline_mode = #tpu.pipeline_mode<synchronous>, transform_indices = @transform_3, window_bounds = array<i64: 4, 32>}, {pipeline_mode = #tpu.pipeline_mode<synchronous>, transform_indices = @transform_4, window_bounds = array<i64: 4, 4>}, {pipeline_mode = #tpu.pipeline_mode<synchronous>, transform_indices = @transform_5, window_bounds = array<i64: 32, 1024>}, {pipeline_mode = #tpu.pipeline_mode<synchronous>, transform_indices = @transform_6, window_bounds = array<i64: 11, 32>}, {pipeline_mode = #tpu.pipeline_mode<synchronous>, transform_indices = @transform_7, window_bounds = array<i64: 32, 36>}, {pipeline_mode = #tpu.pipeline_mode<synchronous>, transform_indices = @transform_8, window_bounds = array<i64: 36, 32>}, {pipeline_mode = #tpu.pipeline_mode<synchronous>, transform_indices = @transform_9, window_bounds = array<i64: 32, 36>}, {transform_indices = @transform_10, window_bounds = array<i64: 1, 3, 256>}, {transform_indices = @transform_11, window_bounds = array<i64: 1, 4, 256>}, {transform_indices = @transform_12, window_bounds = array<i64: 1, 1, 256>}, {transform_indices = @transform_13, window_bounds = array<i64: 1, 4, 768>}, {transform_indices = @transform_14, window_bounds = array<i64: 1, 4, 3>}, {transform_indices = @transform_15, window_bounds = array<i64: 1, 4, 32>}, {transform_indices = @transform_16, window_bounds = array<i64: 1, 4, 1>}, {transform_indices = @transform_17, window_bounds = array<i64: 1, 1, 3>}]} {
    %c0 = arith.constant 0 : index
    %c0_0 = arith.constant 0 : index
    %c0_1 = arith.constant 0 : index
    %0 = vector.load %arg1[%c0, %c0_0, %c0_1] : memref<1x3x256xf32, #tpu.memory_space<vmem>>, vector<1x3x256xf32>
    %1 = vector.shape_cast %0 : vector<1x3x256xf32> to vector<3x256xf32>
    %c0_2 = arith.constant 0 : index
    %c0_3 = arith.constant 0 : index
    %c0_4 = arith.constant 0 : index
    %2 = vector.load %arg2[%c0_2, %c0_3, %c0_4] : memref<1x3x256xf32, #tpu.memory_space<vmem>>, vector<1x3x256xf32>
    %3 = vector.shape_cast %2 : vector<1x3x256xf32> to vector<3x256xf32>
    %c0_5 = arith.constant 0 : index
    %c0_6 = arith.constant 0 : index
    %c0_7 = arith.constant 0 : index
    %4 = vector.load %arg3[%c0_5, %c0_6, %c0_7] : memref<1x1x256xf32, #tpu.memory_space<vmem>>, vector<1x1x256xf32>
    %5 = vector.shape_cast %4 : vector<1x1x256xf32> to vector<1x256xf32>
    %c0_8 = arith.constant 0 : index
    %c0_9 = arith.constant 0 : index
    %6 = vector.load %arg6[%c0_8, %c0_9] : memref<32x1024xbf16, #tpu.memory_space<vmem>>, vector<32x1024xbf16>
    %7 = arith.subf %1, %3 : vector<3x256xf32>
    %8 = arith.mulf %7, %7 : vector<3x256xf32>
    %cst = arith.constant dense<0.000000e+00> : vector<256xf32>
    %9 = vector.multi_reduction <add>, %8, %cst [0] : vector<3x256xf32> to vector<256xf32>
    %10 = vector.shape_cast %9 : vector<256xf32> to vector<1x256xf32>
    %cst_10 = arith.constant 3.000000e+00 : f32
    %11 = vector.broadcast %cst_10 : f32 to vector<1x256xf32>
    %12 = arith.divf %10, %11 : vector<1x256xf32>
    %13 = math.sqrt %12 : vector<1x256xf32>
    %cst_11 = arith.constant dense<0.000000e+00> : vector<1xf32>
    %14 = vector.multi_reduction <add>, %13, %cst_11 [1] : vector<1x256xf32> to vector<1xf32>
    %15 = vector.shape_cast %14 : vector<1xf32> to vector<1x1xf32>
    %cst_12 = arith.constant 2.560000e+02 : f32
    %16 = vector.broadcast %cst_12 : f32 to vector<1x1xf32>
    %17 = arith.divf %15, %16 : vector<1x1xf32>
    %c0_13 = arith.constant 0 : index
    %c0_14 = arith.constant 0 : index
    %18 = vector.load %arg4[%c0_13, %c0_14] : memref<4x32xf32, #tpu.memory_space<vmem>>, vector<4x32xf32>
    %19 = vector.broadcast %17 : vector<1x1xf32> to vector<4x32xf32>
    %20 = arith.addf %18, %19 : vector<4x32xf32>
    %21 = arith.negf %20 : vector<4x32xf32>
    %22 = math.exp %21 : vector<4x32xf32>
    %cst_15 = arith.constant 1.000000e+00 : f32
    %23 = vector.broadcast %cst_15 : f32 to vector<4x32xf32>
    %24 = arith.addf %23, %22 : vector<4x32xf32>
    %25 = arith.divf %23, %24 : vector<4x32xf32>
    %c0_16 = arith.constant 0 : index
    %c0_17 = arith.constant 0 : index
    %26 = vector.load %arg5[%c0_16, %c0_17] : memref<4x4xf32, #tpu.memory_space<vmem>>, vector<4x4xf32>
    %27 = math.tanh %17 : vector<1x1xf32>
    %cst_18 = arith.constant 1.000000e-01 : f32
    %28 = vector.broadcast %cst_18 : f32 to vector<1x1xf32>
    %29 = arith.mulf %28, %27 : vector<1x1xf32>
    %cst_19 = arith.constant 1.000000e+00 : f32
    %30 = vector.broadcast %cst_19 : f32 to vector<1x1xf32>
    %31 = arith.addf %30, %29 : vector<1x1xf32>
    %32 = vector.extract_strided_slice %26 {offsets = [0, 0], sizes = [4, 3], strides = [1, 1]} : vector<4x4xf32> to vector<4x3xf32>
    %33 = vector.broadcast %31 : vector<1x1xf32> to vector<4x3xf32>
    %34 = arith.mulf %32, %33 : vector<4x3xf32>
    %35 = vector.extract_strided_slice %26 {offsets = [0, 3], sizes = [4, 1], strides = [1, 1]} : vector<4x4xf32> to vector<4x1xf32>
    %36 = arith.truncf %25 : vector<4x32xf32> to vector<4x32xbf16>
    %cst_20 = arith.constant dense<0.000000e+00> : vector<4x1024xf32>
    %37 = tpu.matmul %36, %6, %cst_20 {dimension_numbers = #tpu.dot_dimension_numbers<[1], [0], [0], [1], [0, 0, 1, 1], [], []>} : vector<4x32xbf16>, vector<32x1024xbf16>, vector<4x1024xf32> -> vector<4x1024xf32>
    %38 = vector.extract_strided_slice %37 {offsets = [0, 256], sizes = [4, 768], strides = [1, 1]} : vector<4x1024xf32> to vector<4x768xf32>
    %39 = tpu.iota {dimensions = array<i32: 1>} : vector<1x256xi32>
    %c4_i32 = arith.constant 4 : i32
    %40 = vector.broadcast %c4_i32 : i32 to vector<1x256xi32>
    %41 = arith.shrsi %39, %40 : vector<1x256xi32>
    %42 = arith.sitofp %41 : vector<1x256xi32> to vector<1x256xf32>
    %c15_i32 = arith.constant 15 : i32
    %43 = vector.broadcast %c15_i32 : i32 to vector<1x256xi32>
    %44 = arith.andi %39, %43 : vector<1x256xi32>
    %45 = arith.sitofp %44 : vector<1x256xi32> to vector<1x256xf32>
    %cst_21 = arith.constant 0.13333334 : f32
    %46 = vector.broadcast %cst_21 : f32 to vector<1x256xf32>
    %47 = arith.mulf %45, %46 : vector<1x256xf32>
    %cst_22 = arith.constant 1.000000e+00 : f32
    %48 = vector.broadcast %cst_22 : f32 to vector<1x256xf32>
    %49 = arith.subf %47, %48 : vector<1x256xf32>
    %cst_23 = arith.constant 0.13333334 : f32
    %50 = vector.broadcast %cst_23 : f32 to vector<1x256xf32>
    %51 = arith.mulf %42, %50 : vector<1x256xf32>
    %cst_24 = arith.constant 1.000000e+00 : f32
    %52 = vector.broadcast %cst_24 : f32 to vector<1x256xf32>
    %53 = arith.subf %51, %52 : vector<1x256xf32>
    %54 = vector.extract_strided_slice %37 {offsets = [0, 0], sizes = [4, 256], strides = [1, 1]} : vector<4x1024xf32> to vector<4x256xf32>
    %55 = vector.extract_strided_slice %34 {offsets = [0, 0], sizes = [4, 1], strides = [1, 1]} : vector<4x3xf32> to vector<4x1xf32>
    %56 = vector.extract_strided_slice %34 {offsets = [0, 1], sizes = [4, 1], strides = [1, 1]} : vector<4x3xf32> to vector<4x1xf32>
    %57 = vector.extract_strided_slice %34 {offsets = [0, 2], sizes = [4, 1], strides = [1, 1]} : vector<4x3xf32> to vector<4x1xf32>
    %58 = vector.broadcast %49 : vector<1x256xf32> to vector<4x256xf32>
    %59 = vector.broadcast %55 : vector<4x1xf32> to vector<4x256xf32>
    %60 = arith.subf %58, %59 : vector<4x256xf32>
    %61 = arith.mulf %60, %60 : vector<4x256xf32>
    %62 = vector.broadcast %53 : vector<1x256xf32> to vector<4x256xf32>
    %63 = vector.broadcast %56 : vector<4x1xf32> to vector<4x256xf32>
    %64 = arith.subf %62, %63 : vector<4x256xf32>
    %65 = arith.mulf %64, %64 : vector<4x256xf32>
    %66 = arith.addf %61, %65 : vector<4x256xf32>
    %cst_25 = arith.constant 0.000000e+00 : f32
    %67 = vector.broadcast %cst_25 : f32 to vector<4x256xf32>
    %68 = arith.subf %67, %66 : vector<4x256xf32>
    %cst_26 = arith.constant 2.000000e+00 : f32
    %69 = vector.broadcast %cst_26 : f32 to vector<4x1xf32>
    %70 = arith.mulf %69, %57 : vector<4x1xf32>
    %71 = arith.mulf %70, %57 : vector<4x1xf32>
    %cst_27 = arith.constant 9.99999974E-5 : f32
    %72 = vector.broadcast %cst_27 : f32 to vector<4x1xf32>
    %73 = arith.addf %71, %72 : vector<4x1xf32>
    %74 = vector.broadcast %73 : vector<4x1xf32> to vector<4x256xf32>
    %75 = arith.divf %68, %74 : vector<4x256xf32>
    %cst_28 = arith.constant 1.000000e-01 : f32
    %76 = vector.broadcast %cst_28 : f32 to vector<4x256xf32>
    %77 = arith.mulf %76, %54 : vector<4x256xf32>
    %78 = arith.addf %75, %77 : vector<4x256xf32>
    %79 = vector.broadcast %35 : vector<4x1xf32> to vector<4x256xf32>
    %80 = arith.addf %78, %79 : vector<4x256xf32>
    %cst_29 = arith.constant dense<0xFF800000> : vector<256xf32>
    %81 = vector.multi_reduction <maximumf>, %80, %cst_29 [0] : vector<4x256xf32> to vector<256xf32>
    %82 = vector.shape_cast %81 : vector<256xf32> to vector<1x256xf32>
    %83 = arith.maximumf %82, %5 : vector<1x256xf32>
    %84 = vector.broadcast %83 : vector<1x256xf32> to vector<4x256xf32>
    %85 = arith.subf %80, %84 : vector<4x256xf32>
    %86 = math.exp %85 : vector<4x256xf32>
    %87 = arith.subf %5, %83 : vector<1x256xf32>
    %88 = math.exp %87 : vector<1x256xf32>
    %cst_30 = arith.constant dense<0.000000e+00> : vector<256xf32>
    %89 = vector.multi_reduction <add>, %86, %cst_30 [0] : vector<4x256xf32> to vector<256xf32>
    %90 = vector.shape_cast %89 : vector<256xf32> to vector<1x256xf32>
    %91 = arith.addf %90, %88 : vector<1x256xf32>
    %cst_31 = arith.constant 1.000000e+00 : f32
    %92 = vector.broadcast %cst_31 : f32 to vector<1x256xf32>
    %93 = arith.divf %92, %91 : vector<1x256xf32>
    %94 = vector.broadcast %93 : vector<1x256xf32> to vector<4x256xf32>
    %95 = arith.mulf %86, %94 : vector<4x256xf32>
    %cst_32 = arith.constant dense<0.000000e+00> : vector<4xf32>
    %96 = vector.multi_reduction <add>, %95, %cst_32 [1] : vector<4x256xf32> to vector<4xf32>
    %97 = vector.shape_cast %96 : vector<4xf32> to vector<4x1xf32>
    %cst_33 = arith.constant 9.99999997E-7 : f32
    %98 = vector.broadcast %cst_33 : f32 to vector<4x1xf32>
    %99 = arith.addf %97, %98 : vector<4x1xf32>
    %cst_34 = arith.constant dense<0.000000e+00> : vector<4x3xf32>
    %100 = tpu.matmul %95, %1, %cst_34 {dimension_numbers = #tpu.dot_dimension_numbers<[1], [1], [0], [0], [0, 0, 1, 0], [], []>} : vector<4x256xf32>, vector<3x256xf32>, vector<4x3xf32> -> vector<4x3xf32>
    %101 = vector.broadcast %99 : vector<4x1xf32> to vector<4x3xf32>
    %102 = arith.divf %100, %101 : vector<4x3xf32>
    %103 = vector.extract_strided_slice %38 {offsets = [0, 0], sizes = [4, 256], strides = [1, 1]} : vector<4x768xf32> to vector<4x256xf32>
    %cst_35 = arith.constant dense<0.000000e+00> : vector<4xf32>
    %104 = vector.multi_reduction <add>, %103, %cst_35 [1] : vector<4x256xf32> to vector<4xf32>
    %105 = vector.shape_cast %104 : vector<4xf32> to vector<4x1xf32>
    %cst_36 = arith.constant 2.560000e+02 : f32
    %106 = vector.broadcast %cst_36 : f32 to vector<4x1xf32>
    %107 = arith.divf %105, %106 : vector<4x1xf32>
    %108 = vector.extract_strided_slice %38 {offsets = [0, 256], sizes = [4, 256], strides = [1, 1]} : vector<4x768xf32> to vector<4x256xf32>
    %cst_37 = arith.constant dense<0.000000e+00> : vector<4xf32>
    %109 = vector.multi_reduction <add>, %108, %cst_37 [1] : vector<4x256xf32> to vector<4xf32>
    %110 = vector.shape_cast %109 : vector<4xf32> to vector<4x1xf32>
    %cst_38 = arith.constant 2.560000e+02 : f32
    %111 = vector.broadcast %cst_38 : f32 to vector<4x1xf32>
    %112 = arith.divf %110, %111 : vector<4x1xf32>
    %113 = vector.extract_strided_slice %38 {offsets = [0, 512], sizes = [4, 256], strides = [1, 1]} : vector<4x768xf32> to vector<4x256xf32>
    %cst_39 = arith.constant dense<0.000000e+00> : vector<4xf32>
    %114 = vector.multi_reduction <add>, %113, %cst_39 [1] : vector<4x256xf32> to vector<4xf32>
    %115 = vector.shape_cast %114 : vector<4xf32> to vector<4x1xf32>
    %cst_40 = arith.constant 2.560000e+02 : f32
    %116 = vector.broadcast %cst_40 : f32 to vector<4x1xf32>
    %117 = arith.divf %115, %116 : vector<4x1xf32>
    %118 = tpu.concatenate %107, %112, %117 in 1 : vector<4x1xf32>, vector<4x1xf32>, vector<4x1xf32> -> vector<4x3xf32>
    %119 = vector.broadcast %13 : vector<1x256xf32> to vector<4x256xf32>
    %120 = arith.mulf %95, %119 : vector<4x256xf32>
    %cst_41 = arith.constant dense<0.000000e+00> : vector<4xf32>
    %121 = vector.multi_reduction <add>, %120, %cst_41 [1] : vector<4x256xf32> to vector<4xf32>
    %122 = vector.shape_cast %121 : vector<4xf32> to vector<4x1xf32>
    %123 = arith.divf %122, %99 : vector<4x1xf32>
    %124 = tpu.concatenate %102, %118, %123, %34, %35 in 1 : vector<4x3xf32>, vector<4x3xf32>, vector<4x1xf32>, vector<4x3xf32>, vector<4x1xf32> -> vector<4x11xf32>
    %c0_42 = arith.constant 0 : index
    %c0_43 = arith.constant 0 : index
    %125 = vector.load %arg7[%c0_42, %c0_43] : memref<11x32xf32, #tpu.memory_space<vmem>>, vector<11x32xf32>
    %cst_44 = arith.constant dense<0.000000e+00> : vector<4x32xf32>
    %126 = tpu.matmul %124, %125, %cst_44 {dimension_numbers = #tpu.dot_dimension_numbers<[1], [0], [0], [1], [0, 0, 1, 1], [], []>} : vector<4x11xf32>, vector<11x32xf32>, vector<4x32xf32> -> vector<4x32xf32>
    %127 = math.tanh %126 : vector<4x32xf32>
    %c0_45 = arith.constant 0 : index
    %c0_46 = arith.constant 0 : index
    %128 = vector.load %arg8[%c0_45, %c0_46] : memref<32x36xf32, #tpu.memory_space<vmem>>, vector<32x36xf32>
    %cst_47 = arith.constant dense<0.000000e+00> : vector<4x36xf32>
    %129 = tpu.matmul %127, %128, %cst_47 {dimension_numbers = #tpu.dot_dimension_numbers<[1], [0], [0], [1], [0, 0, 1, 1], [], []>} : vector<4x32xf32>, vector<32x36xf32>, vector<4x36xf32> -> vector<4x36xf32>
    %130 = vector.extract_strided_slice %129 {offsets = [0, 0], sizes = [4, 3], strides = [1, 1]} : vector<4x36xf32> to vector<4x3xf32>
    %131 = math.tanh %130 : vector<4x3xf32>
    %cst_48 = arith.constant 1.000000e-01 : f32
    %132 = vector.broadcast %cst_48 : f32 to vector<4x3xf32>
    %133 = arith.mulf %132, %131 : vector<4x3xf32>
    %134 = arith.addf %34, %133 : vector<4x3xf32>
    %135 = vector.extract_strided_slice %129 {offsets = [0, 3], sizes = [4, 32], strides = [1, 1]} : vector<4x36xf32> to vector<4x32xf32>
    %136 = arith.negf %135 : vector<4x32xf32>
    %137 = math.exp %136 : vector<4x32xf32>
    %cst_49 = arith.constant 1.000000e+00 : f32
    %138 = vector.broadcast %cst_49 : f32 to vector<4x32xf32>
    %139 = arith.addf %138, %137 : vector<4x32xf32>
    %140 = arith.divf %138, %139 : vector<4x32xf32>
    %141 = vector.extract_strided_slice %129 {offsets = [0, 35], sizes = [4, 1], strides = [1, 1]} : vector<4x36xf32> to vector<4x1xf32>
    %cst_50 = arith.constant 1.000000e-01 : f32
    %142 = vector.broadcast %cst_50 : f32 to vector<4x1xf32>
    %143 = arith.mulf %142, %141 : vector<4x1xf32>
    %144 = arith.addf %35, %143 : vector<4x1xf32>
    %145 = tpu.concatenate %134, %140, %144 in 1 : vector<4x3xf32>, vector<4x32xf32>, vector<4x1xf32> -> vector<4x36xf32>
    %c0_51 = arith.constant 0 : index
    %c0_52 = arith.constant 0 : index
    %146 = vector.load %arg9[%c0_51, %c0_52] : memref<36x32xf32, #tpu.memory_space<vmem>>, vector<36x32xf32>
    %cst_53 = arith.constant dense<0.000000e+00> : vector<4x32xf32>
    %147 = tpu.matmul %145, %146, %cst_53 {dimension_numbers = #tpu.dot_dimension_numbers<[1], [0], [0], [1], [0, 0, 1, 1], [], []>} : vector<4x36xf32>, vector<36x32xf32>, vector<4x32xf32> -> vector<4x32xf32>
    %148 = math.tanh %147 : vector<4x32xf32>
    %c0_54 = arith.constant 0 : index
    %c0_55 = arith.constant 0 : index
    %149 = vector.load %arg10[%c0_54, %c0_55] : memref<32x36xf32, #tpu.memory_space<vmem>>, vector<32x36xf32>
    %cst_56 = arith.constant dense<0.000000e+00> : vector<4x36xf32>
    %150 = tpu.matmul %148, %149, %cst_56 {dimension_numbers = #tpu.dot_dimension_numbers<[1], [0], [0], [1], [0, 0, 1, 1], [], []>} : vector<4x32xf32>, vector<32x36xf32>, vector<4x36xf32> -> vector<4x36xf32>
    %151 = vector.extract_strided_slice %150 {offsets = [0, 0], sizes = [4, 3], strides = [1, 1]} : vector<4x36xf32> to vector<4x3xf32>
    %152 = math.tanh %151 : vector<4x3xf32>
    %cst_57 = arith.constant 1.000000e-01 : f32
    %153 = vector.broadcast %cst_57 : f32 to vector<4x3xf32>
    %154 = arith.mulf %153, %152 : vector<4x3xf32>
    %155 = arith.addf %134, %154 : vector<4x3xf32>
    %156 = vector.extract_strided_slice %150 {offsets = [0, 3], sizes = [4, 32], strides = [1, 1]} : vector<4x36xf32> to vector<4x32xf32>
    %157 = arith.addf %140, %156 : vector<4x32xf32>
    %158 = arith.negf %157 : vector<4x32xf32>
    %159 = math.exp %158 : vector<4x32xf32>
    %cst_58 = arith.constant 1.000000e+00 : f32
    %160 = vector.broadcast %cst_58 : f32 to vector<4x32xf32>
    %161 = arith.addf %160, %159 : vector<4x32xf32>
    %162 = arith.divf %160, %161 : vector<4x32xf32>
    %163 = vector.extract_strided_slice %150 {offsets = [0, 35], sizes = [4, 1], strides = [1, 1]} : vector<4x36xf32> to vector<4x1xf32>
    %cst_59 = arith.constant 1.000000e-01 : f32
    %164 = vector.broadcast %cst_59 : f32 to vector<4x1xf32>
    %165 = arith.mulf %164, %163 : vector<4x1xf32>
    %166 = arith.addf %144, %165 : vector<4x1xf32>
    %cst_60 = arith.constant dense<0.000000e+00> : vector<3xf32>
    %167 = vector.multi_reduction <add>, %155, %cst_60 [0] : vector<4x3xf32> to vector<3xf32>
    %168 = vector.shape_cast %167 : vector<3xf32> to vector<1x3xf32>
    %cst_61 = arith.constant 4.000000e+00 : f32
    %169 = vector.broadcast %cst_61 : f32 to vector<1x3xf32>
    %170 = arith.divf %168, %169 : vector<1x3xf32>
    %171 = arith.truncf %162 : vector<4x32xf32> to vector<4x32xbf16>
    %cst_62 = arith.constant dense<0.000000e+00> : vector<4x1024xf32>
    %172 = tpu.matmul %171, %6, %cst_62 {dimension_numbers = #tpu.dot_dimension_numbers<[1], [0], [0], [1], [0, 0, 1, 1], [], []>} : vector<4x32xbf16>, vector<32x1024xbf16>, vector<4x1024xf32> -> vector<4x1024xf32>
    %173 = vector.extract_strided_slice %172 {offsets = [0, 256], sizes = [4, 768], strides = [1, 1]} : vector<4x1024xf32> to vector<4x768xf32>
    %cst_63 = arith.constant 2.500000e+00 : f32
    %174 = vector.broadcast %cst_63 : f32 to vector<4x768xf32>
    %175 = arith.subf %173, %174 : vector<4x768xf32>
    %176 = arith.negf %175 : vector<4x768xf32>
    %177 = math.exp %176 : vector<4x768xf32>
    %cst_64 = arith.constant 1.000000e+00 : f32
    %178 = vector.broadcast %cst_64 : f32 to vector<4x768xf32>
    %179 = arith.addf %178, %177 : vector<4x768xf32>
    %180 = arith.divf %178, %179 : vector<4x768xf32>
    %181 = vector.extract_strided_slice %172 {offsets = [0, 0], sizes = [4, 256], strides = [1, 1]} : vector<4x1024xf32> to vector<4x256xf32>
    %182 = vector.extract_strided_slice %155 {offsets = [0, 0], sizes = [4, 1], strides = [1, 1]} : vector<4x3xf32> to vector<4x1xf32>
    %183 = vector.extract_strided_slice %155 {offsets = [0, 1], sizes = [4, 1], strides = [1, 1]} : vector<4x3xf32> to vector<4x1xf32>
    %184 = vector.extract_strided_slice %155 {offsets = [0, 2], sizes = [4, 1], strides = [1, 1]} : vector<4x3xf32> to vector<4x1xf32>
    %185 = vector.broadcast %49 : vector<1x256xf32> to vector<4x256xf32>
    %186 = vector.broadcast %182 : vector<4x1xf32> to vector<4x256xf32>
    %187 = arith.subf %185, %186 : vector<4x256xf32>
    %188 = arith.mulf %187, %187 : vector<4x256xf32>
    %189 = vector.broadcast %53 : vector<1x256xf32> to vector<4x256xf32>
    %190 = vector.broadcast %183 : vector<4x1xf32> to vector<4x256xf32>
    %191 = arith.subf %189, %190 : vector<4x256xf32>
    %192 = arith.mulf %191, %191 : vector<4x256xf32>
    %193 = arith.addf %188, %192 : vector<4x256xf32>
    %cst_65 = arith.constant 0.000000e+00 : f32
    %194 = vector.broadcast %cst_65 : f32 to vector<4x256xf32>
    %195 = arith.subf %194, %193 : vector<4x256xf32>
    %cst_66 = arith.constant 2.000000e+00 : f32
    %196 = vector.broadcast %cst_66 : f32 to vector<4x1xf32>
    %197 = arith.mulf %196, %184 : vector<4x1xf32>
    %198 = arith.mulf %197, %184 : vector<4x1xf32>
    %cst_67 = arith.constant 9.99999974E-5 : f32
    %199 = vector.broadcast %cst_67 : f32 to vector<4x1xf32>
    %200 = arith.addf %198, %199 : vector<4x1xf32>
    %201 = vector.broadcast %200 : vector<4x1xf32> to vector<4x256xf32>
    %202 = arith.divf %195, %201 : vector<4x256xf32>
    %cst_68 = arith.constant 1.000000e-01 : f32
    %203 = vector.broadcast %cst_68 : f32 to vector<4x256xf32>
    %204 = arith.mulf %203, %181 : vector<4x256xf32>
    %205 = arith.addf %202, %204 : vector<4x256xf32>
    %206 = vector.broadcast %166 : vector<4x1xf32> to vector<4x256xf32>
    %207 = arith.addf %205, %206 : vector<4x256xf32>
    %cst_69 = arith.constant dense<0xFF800000> : vector<256xf32>
    %208 = vector.multi_reduction <maximumf>, %207, %cst_69 [0] : vector<4x256xf32> to vector<256xf32>
    %209 = vector.shape_cast %208 : vector<256xf32> to vector<1x256xf32>
    %210 = arith.maximumf %209, %5 : vector<1x256xf32>
    %211 = vector.broadcast %210 : vector<1x256xf32> to vector<4x256xf32>
    %212 = arith.subf %207, %211 : vector<4x256xf32>
    %213 = math.exp %212 : vector<4x256xf32>
    %214 = arith.subf %5, %210 : vector<1x256xf32>
    %215 = math.exp %214 : vector<1x256xf32>
    %cst_70 = arith.constant dense<0.000000e+00> : vector<256xf32>
    %216 = vector.multi_reduction <add>, %213, %cst_70 [0] : vector<4x256xf32> to vector<256xf32>
    %217 = vector.shape_cast %216 : vector<256xf32> to vector<1x256xf32>
    %218 = arith.addf %217, %215 : vector<1x256xf32>
    %cst_71 = arith.constant 1.000000e+00 : f32
    %219 = vector.broadcast %cst_71 : f32 to vector<1x256xf32>
    %220 = arith.divf %219, %218 : vector<1x256xf32>
    %221 = vector.broadcast %220 : vector<1x256xf32> to vector<4x256xf32>
    %222 = arith.mulf %213, %221 : vector<4x256xf32>
    %223 = arith.mulf %215, %220 : vector<1x256xf32>
    %224 = vector.extract_strided_slice %180 {offsets = [0, 0], sizes = [4, 256], strides = [1, 1]} : vector<4x768xf32> to vector<4x256xf32>
    %225 = arith.mulf %222, %224 : vector<4x256xf32>
    %cst_72 = arith.constant dense<0.000000e+00> : vector<256xf32>
    %226 = vector.multi_reduction <add>, %225, %cst_72 [0] : vector<4x256xf32> to vector<256xf32>
    %227 = vector.shape_cast %226 : vector<256xf32> to vector<1x256xf32>
    %228 = vector.extract_strided_slice %180 {offsets = [0, 256], sizes = [4, 256], strides = [1, 1]} : vector<4x768xf32> to vector<4x256xf32>
    %229 = arith.mulf %222, %228 : vector<4x256xf32>
    %cst_73 = arith.constant dense<0.000000e+00> : vector<256xf32>
    %230 = vector.multi_reduction <add>, %229, %cst_73 [0] : vector<4x256xf32> to vector<256xf32>
    %231 = vector.shape_cast %230 : vector<256xf32> to vector<1x256xf32>
    %232 = vector.extract_strided_slice %180 {offsets = [0, 512], sizes = [4, 256], strides = [1, 1]} : vector<4x768xf32> to vector<4x256xf32>
    %233 = arith.mulf %222, %232 : vector<4x256xf32>
    %cst_74 = arith.constant dense<0.000000e+00> : vector<256xf32>
    %234 = vector.multi_reduction <add>, %233, %cst_74 [0] : vector<4x256xf32> to vector<256xf32>
    %235 = vector.shape_cast %234 : vector<256xf32> to vector<1x256xf32>
    %236 = tpu.concatenate %227, %231, %235 in 0 : vector<1x256xf32>, vector<1x256xf32>, vector<1x256xf32> -> vector<3x256xf32>
    %237 = vector.broadcast %223 : vector<1x256xf32> to vector<3x256xf32>
    %238 = arith.mulf %237, %3 : vector<3x256xf32>
    %239 = arith.addf %236, %238 : vector<3x256xf32>
    %c0_75 = arith.constant 0 : index
    %c0_76 = arith.constant 0 : index
    %c0_77 = arith.constant 0 : index
    %240 = vector.load %arg11[%c0_75, %c0_76, %c0_77] : memref<1x3x256xf32, #tpu.memory_space<vmem>>, vector<1x3x256xf32>
    %241 = vector.shape_cast %240 : vector<1x3x256xf32> to vector<3x256xf32>
    %242 = vector.shape_cast %239 : vector<3x256xf32> to vector<1x3x256xf32>
    tpu.vector_store %arg11[%c0_75, %c0_76, %c0_77], %242 {strides = array<i32>} : memref<1x3x256xf32, #tpu.memory_space<vmem>>, vector<1x3x256xf32>,
    %c0_78 = arith.constant 0 : index
    %c0_79 = arith.constant 0 : index
    %c0_80 = arith.constant 0 : index
    %243 = vector.load %arg12[%c0_78, %c0_79, %c0_80] : memref<1x4x256xf32, #tpu.memory_space<vmem>>, vector<1x4x256xf32>
    %244 = vector.shape_cast %243 : vector<1x4x256xf32> to vector<4x256xf32>
    %245 = vector.shape_cast %222 : vector<4x256xf32> to vector<1x4x256xf32>
    tpu.vector_store %arg12[%c0_78, %c0_79, %c0_80], %245 {strides = array<i32>} : memref<1x4x256xf32, #tpu.memory_space<vmem>>, vector<1x4x256xf32>,
    %c0_81 = arith.constant 0 : index
    %c0_82 = arith.constant 0 : index
    %c0_83 = arith.constant 0 : index
    %246 = vector.load %arg13[%c0_81, %c0_82, %c0_83] : memref<1x1x256xf32, #tpu.memory_space<vmem>>, vector<1x1x256xf32>
    %247 = vector.shape_cast %246 : vector<1x1x256xf32> to vector<1x256xf32>
    %248 = vector.shape_cast %223 : vector<1x256xf32> to vector<1x1x256xf32>
    tpu.vector_store %arg13[%c0_81, %c0_82, %c0_83], %248 {strides = array<i32>} : memref<1x1x256xf32, #tpu.memory_space<vmem>>, vector<1x1x256xf32>,
    %c0_84 = arith.constant 0 : index
    %c0_85 = arith.constant 0 : index
    %c0_86 = arith.constant 0 : index
    %249 = vector.load %arg14[%c0_84, %c0_85, %c0_86] : memref<1x4x768xf32, #tpu.memory_space<vmem>>, vector<1x4x768xf32>
    %250 = vector.shape_cast %249 : vector<1x4x768xf32> to vector<4x768xf32>
    %251 = vector.shape_cast %180 : vector<4x768xf32> to vector<1x4x768xf32>
    tpu.vector_store %arg14[%c0_84, %c0_85, %c0_86], %251 {strides = array<i32>} : memref<1x4x768xf32, #tpu.memory_space<vmem>>, vector<1x4x768xf32>,
    %c0_87 = arith.constant 0 : index
    %c0_88 = arith.constant 0 : index
    %c0_89 = arith.constant 0 : index
    %252 = vector.load %arg15[%c0_87, %c0_88, %c0_89] : memref<1x4x3xf32, #tpu.memory_space<vmem>>, vector<1x4x3xf32>
    %253 = vector.shape_cast %252 : vector<1x4x3xf32> to vector<4x3xf32>
    %254 = vector.shape_cast %155 : vector<4x3xf32> to vector<1x4x3xf32>
    tpu.vector_store %arg15[%c0_87, %c0_88, %c0_89], %254 {strides = array<i32>} : memref<1x4x3xf32, #tpu.memory_space<vmem>>, vector<1x4x3xf32>,
    %c0_90 = arith.constant 0 : index
    %c0_91 = arith.constant 0 : index
    %c0_92 = arith.constant 0 : index
    %255 = vector.load %arg16[%c0_90, %c0_91, %c0_92] : memref<1x4x32xf32, #tpu.memory_space<vmem>>, vector<1x4x32xf32>
    %256 = vector.shape_cast %255 : vector<1x4x32xf32> to vector<4x32xf32>
    %257 = vector.shape_cast %162 : vector<4x32xf32> to vector<1x4x32xf32>
    tpu.vector_store %arg16[%c0_90, %c0_91, %c0_92], %257 {strides = array<i32>} : memref<1x4x32xf32, #tpu.memory_space<vmem>>, vector<1x4x32xf32>,
    %c0_93 = arith.constant 0 : index
    %c0_94 = arith.constant 0 : index
    %c0_95 = arith.constant 0 : index
    %258 = vector.load %arg17[%c0_93, %c0_94, %c0_95] : memref<1x4x1xf32, #tpu.memory_space<vmem>>, vector<1x4x1xf32>
    %259 = vector.shape_cast %258 : vector<1x4x1xf32> to vector<4x1xf32>
    %260 = vector.shape_cast %166 : vector<4x1xf32> to vector<1x4x1xf32>
    tpu.vector_store %arg17[%c0_93, %c0_94, %c0_95], %260 {strides = array<i32>} : memref<1x4x1xf32, #tpu.memory_space<vmem>>, vector<1x4x1xf32>,
    %c0_96 = arith.constant 0 : index
    %c0_97 = arith.constant 0 : index
    %c0_98 = arith.constant 0 : index
    %261 = vector.load %arg18[%c0_96, %c0_97, %c0_98] : memref<1x1x3xf32, #tpu.memory_space<vmem>>, vector<1x1x3xf32>
    %262 = vector.shape_cast %261 : vector<1x1x3xf32> to vector<1x3xf32>
    %263 = vector.shape_cast %170 : vector<1x3xf32> to vector<1x1x3xf32>
    tpu.vector_store %arg18[%c0_96, %c0_97, %c0_98], %263 {strides = array<i32>} : memref<1x1x3xf32, #tpu.memory_space<vmem>>, vector<1x1x3xf32>,
    return
  }
  func.func @transform_0(%arg0: i32) -> (i32, i32, i32) {
    %c0_i32 = arith.constant 0 : i32
    %c0_i32_0 = arith.constant 0 : i32
    %c0_i32_1 = arith.constant 0 : i32
    return %arg0, %c0_i32, %c0_i32_0 : i32, i32, i32
  }
  func.func @transform_1(%arg0: i32) -> (i32, i32, i32) {
    %c0_i32 = arith.constant 0 : i32
    %c0_i32_0 = arith.constant 0 : i32
    %c0_i32_1 = arith.constant 0 : i32
    %c0_i32_2 = arith.constant 0 : i32
    return %c0_i32, %c0_i32_0, %c0_i32_1 : i32, i32, i32
  }
  func.func @transform_2(%arg0: i32) -> (i32, i32, i32) {
    %c0_i32 = arith.constant 0 : i32
    %c0_i32_0 = arith.constant 0 : i32
    %c0_i32_1 = arith.constant 0 : i32
    %c0_i32_2 = arith.constant 0 : i32
    return %c0_i32, %c0_i32_0, %c0_i32_1 : i32, i32, i32
  }
  func.func @transform_3(%arg0: i32) -> (i32, i32) {
    %c0_i32 = arith.constant 0 : i32
    %c0_i32_0 = arith.constant 0 : i32
    %c0_i32_1 = arith.constant 0 : i32
    return %c0_i32, %c0_i32_0 : i32, i32
  }
  func.func @transform_4(%arg0: i32) -> (i32, i32) {
    %c0_i32 = arith.constant 0 : i32
    %c0_i32_0 = arith.constant 0 : i32
    %c0_i32_1 = arith.constant 0 : i32
    return %c0_i32, %c0_i32_0 : i32, i32
  }
  func.func @transform_5(%arg0: i32) -> (i32, i32) {
    %c0_i32 = arith.constant 0 : i32
    %c0_i32_0 = arith.constant 0 : i32
    %c0_i32_1 = arith.constant 0 : i32
    return %c0_i32, %c0_i32_0 : i32, i32
  }
  func.func @transform_6(%arg0: i32) -> (i32, i32) {
    %c0_i32 = arith.constant 0 : i32
    %c0_i32_0 = arith.constant 0 : i32
    %c0_i32_1 = arith.constant 0 : i32
    return %c0_i32, %c0_i32_0 : i32, i32
  }
  func.func @transform_7(%arg0: i32) -> (i32, i32) {
    %c0_i32 = arith.constant 0 : i32
    %c0_i32_0 = arith.constant 0 : i32
    %c0_i32_1 = arith.constant 0 : i32
    return %c0_i32, %c0_i32_0 : i32, i32
  }
  func.func @transform_8(%arg0: i32) -> (i32, i32) {
    %c0_i32 = arith.constant 0 : i32
    %c0_i32_0 = arith.constant 0 : i32
    %c0_i32_1 = arith.constant 0 : i32
    return %c0_i32, %c0_i32_0 : i32, i32
  }
  func.func @transform_9(%arg0: i32) -> (i32, i32) {
    %c0_i32 = arith.constant 0 : i32
    %c0_i32_0 = arith.constant 0 : i32
    %c0_i32_1 = arith.constant 0 : i32
    return %c0_i32, %c0_i32_0 : i32, i32
  }
  func.func @transform_10(%arg0: i32) -> (i32, i32, i32) {
    %c0_i32 = arith.constant 0 : i32
    %c0_i32_0 = arith.constant 0 : i32
    %c0_i32_1 = arith.constant 0 : i32
    return %arg0, %c0_i32, %c0_i32_0 : i32, i32, i32
  }
  func.func @transform_11(%arg0: i32) -> (i32, i32, i32) {
    %c0_i32 = arith.constant 0 : i32
    %c0_i32_0 = arith.constant 0 : i32
    %c0_i32_1 = arith.constant 0 : i32
    return %arg0, %c0_i32, %c0_i32_0 : i32, i32, i32
  }
  func.func @transform_12(%arg0: i32) -> (i32, i32, i32) {
    %c0_i32 = arith.constant 0 : i32
    %c0_i32_0 = arith.constant 0 : i32
    %c0_i32_1 = arith.constant 0 : i32
    return %arg0, %c0_i32, %c0_i32_0 : i32, i32, i32
  }
  func.func @transform_13(%arg0: i32) -> (i32, i32, i32) {
    %c0_i32 = arith.constant 0 : i32
    %c0_i32_0 = arith.constant 0 : i32
    %c0_i32_1 = arith.constant 0 : i32
    return %arg0, %c0_i32, %c0_i32_0 : i32, i32, i32
  }
  func.func @transform_14(%arg0: i32) -> (i32, i32, i32) {
    %c0_i32 = arith.constant 0 : i32
    %c0_i32_0 = arith.constant 0 : i32
    %c0_i32_1 = arith.constant 0 : i32
    return %arg0, %c0_i32, %c0_i32_0 : i32, i32, i32
  }
  func.func @transform_15(%arg0: i32) -> (i32, i32, i32) {
    %c0_i32 = arith.constant 0 : i32
    %c0_i32_0 = arith.constant 0 : i32
    %c0_i32_1 = arith.constant 0 : i32
    return %arg0, %c0_i32, %c0_i32_0 : i32, i32, i32
  }
  func.func @transform_16(%arg0: i32) -> (i32, i32, i32) {
    %c0_i32 = arith.constant 0 : i32
    %c0_i32_0 = arith.constant 0 : i32
    %c0_i32_1 = arith.constant 0 : i32
    return %arg0, %c0_i32, %c0_i32_0 : i32, i32, i32
  }
  func.func @transform_17(%arg0: i32) -> (i32, i32, i32) {
    %c0_i32 = arith.constant 0 : i32
    %c0_i32_0 = arith.constant 0 : i32
    %c0_i32_1 = arith.constant 0 : i32
    return %arg0, %c0_i32, %c0_i32_0 : i32, i32, i32
  }
}

</mosaic_0001>

<llo_original>
// kernel: loci_forward.1
$region0: #{loci_forward.1}
  #allocation0 [shape = 'u32[]', space=smem, size = 0x4, offset = 0x4, fixed_abs, tag = 'smem constant byte address 0x4 - core index']
  #allocation1 [shape = 'u32[144,128]{1,0:T(1,128)}', space=vmem, size = 0x12000, scoped, tag = 'internal scratch']
  %s0 = inlined_call_operand.vmem [shape: f32[2,3,256], index: 0, kind: input, shape index: {}]
  %s1 = inlined_call_operand.vmem [shape: f32[1,3,256], index: 1, kind: input, shape index: {}]
  %s2 = inlined_call_operand.vmem [shape: f32[1,1,256], index: 2, kind: input, shape index: {}]
  %s3 = inlined_call_operand.vmem [shape: f32[4,32], index: 3, kind: input, shape index: {}]
  %s4 = inlined_call_operand.hbm [shape: f32[4,4], index: 4, kind: input, shape index: {}]
  %s5 = inlined_call_operand.vmem [shape: bf16[32,1024], index: 5, kind: input, shape index: {}]
  %s6 = inlined_call_operand.vmem [shape: f32[11,32], index: 6, kind: input, shape index: {}]
  %s7 = inlined_call_operand.vmem [shape: f32[32,36], index: 7, kind: input, shape index: {}]
  %s8 = inlined_call_operand.vmem [shape: f32[36,32], index: 8, kind: input, shape index: {}]
  %s9 = inlined_call_operand.vmem [shape: f32[32,36], index: 9, kind: input, shape index: {}]
  %s10 = inlined_call_operand.vmem [shape: f32[2,3,256], index: 10, kind: output, shape index: {0}]
  %s11 = inlined_call_operand.vmem [shape: f32[2,4,256], index: 11, kind: output, shape index: {1}]
  %s12 = inlined_call_operand.vmem [shape: f32[2,1,256], index: 12, kind: output, shape index: {2}]
  %s13 = inlined_call_operand.vmem [shape: f32[2,4,768], index: 13, kind: output, shape index: {3}]
  %s14 = inlined_call_operand.vmem [shape: f32[2,4,3], index: 14, kind: output, shape index: {4}]
  %s15 = inlined_call_operand.vmem [shape: f32[2,4,32], index: 15, kind: output, shape index: {5}]
  %s16 = inlined_call_operand.vmem [shape: f32[2,4,1], index: 16, kind: output, shape index: {6}]
  %s17 = inlined_call_operand.hbm [shape: f32[2,1,3], index: 17, kind: output, shape index: {7}]
  %18 = xla_tuple %s10, %s11, %s12, %s13, %s14, %s15, %s16, %s17
  %s19 = sld [smem:[#allocation0]]
  $region133: #{loci_forward.1} parent=0
    _
  %s21 = ssub.s32 1, %s19
  %s22 = scalar_select 0, %s21, %s19
  $region1: #{loci_forward.1} parent=0
    #allocation2 [shape = 'u8[2048]{0}', space=vmem, size = 0x800, scoped, tag = 'input window, operand 4, single buffered']
    #allocation3 [shape = 's32[2]{0}', space=sflag, size = 0x8, scoped, tag = 'scoped memory for loci_forward.1']
    #allocation4 [shape = 's32[2]{0}', space=sflag, size = 0x8, scoped, tag = 'scoped memory for loci_forward.1']
    #allocation5 [shape = 'u8[1024]{0}', space=vmem, size = 0x400, scoped, tag = 'output window, operand 7']
    %23 = vsyncpa [#allocation3], 0
    %24 = vsyncpa [#allocation4], 0
    %s25 = scalar_lea.sflag [#allocation4], 1
    %26 = vsyncpa %s25, 0
    loop: start=0, step=1, limit=4
    $region2: #{loci_forward.1} parent=1 // loop_pre_header
      _
    $region3: #{loci_forward.1} parent=1 // loop_header
      %s28 = sphi 0, %s32
      %p29 = scmp.ge.s32.totalorder %s28, 4
      %s38 = sphi 0, %s40
      %s41 = sphi 0, %s38
      %s42 = sphi 0, %s41
      %s58 = sphi 0, %s42
      %s62 = sphi 0, %s62
      %s64 = sphi 0, %s62
      %s65 = sphi 0, %s64
      %s79 = sphi 0, %s65
      %s83 = sphi 0, %s83
      %s85 = sphi 0, %s83
      %s86 = sphi 0, %s85
      %s100 = sphi 0, %s86
      %s104 = sphi 0, %s104
      %s106 = sphi 0, %s104
      %s107 = sphi 0, %s106
      %s121 = sphi 0, %s107
      %s125 = sphi 0, %s125
      %s127 = sphi 0, %s125
      %s128 = sphi 0, %s127
      %s142 = sphi 0, %s128
      %s146 = sphi 0, %s146
      %s148 = sphi 0, %s146
      %s149 = sphi 0, %s148
      %s163 = sphi 0, %s149
      %s167 = sphi 0, %s167
      %s169 = sphi 0, %s167
      %s170 = sphi 0, %s169
      %s184 = sphi 0, %s170
      %s188 = sphi 0, %s188
      %s190 = sphi 0, %s188
      %s191 = sphi 0, %s190
      %s205 = sphi 0, %s191
      %s209 = sphi 0, %s209
      %s211 = sphi 0, %s209
      %s212 = sphi 0, %s211
      %s226 = sphi 0, %s212
      %s230 = sphi 0, %s230
      %s232 = sphi 0, %s230
      %s233 = sphi 0, %s232
      %s247 = sphi 0, %s233
      %s253 = sphi 0, %s255
      %s256 = sphi 0, %s253
      %s257 = sphi 0, %s256
      %s273 = sphi 0, %s257
      %s279 = sphi 0, %s281
      %s282 = sphi 0, %s279
      %s283 = sphi 0, %s282
      %s299 = sphi 0, %s283
      %s305 = sphi 0, %s307
      %s308 = sphi 0, %s305
      %s309 = sphi 0, %s308
      %s325 = sphi 0, %s309
      %s331 = sphi 0, %s333
      %s334 = sphi 0, %s331
      %s335 = sphi 0, %s334
      %s351 = sphi 0, %s335
      %s357 = sphi 0, %s359
      %s360 = sphi 0, %s357
      %s361 = sphi 0, %s360
      %s377 = sphi 0, %s361
      %s383 = sphi 0, %s385
      %s386 = sphi 0, %s383
      %s387 = sphi 0, %s386
      %s403 = sphi 0, %s387
      %s409 = sphi 0, %s411
      %s412 = sphi 0, %s409
      %s413 = sphi 0, %s412
      %s429 = sphi 0, %s413
      %s435 = sphi 0, %s437
      %s438 = sphi 0, %s435
      %s439 = sphi 0, %s438
      %s455 = sphi 0, %s439
    $region4: #{loci_forward.1} parent=1 // loop_header_branch
      %31 = sbr.rel (%p29) target = $region8
    $region5: #{loci_forward.1} parent=1 // loop_body
      %s33 = ssub.s32 %s28, 1
      %s34 = ssub.s32 %s28, 2
      %s35 = sadd.s32 %s28, 1
      %s36 = ssub.s32 %s28, %s35
      %p37 = scmp.eq.s32.totalorder %s36, 0
      %s39 = sadd.s32 %s38, 1
      %s40 = scalar_select %p37, %s38, %s39
      %p43 = pneg %p37
      %p44 = scmp.eq.s32.totalorder %s28, 1
      %p45 = por %p43, %p44
      %p46 = scmp.ne.s32.totalorder %s38, %s41
      %p47 = scmp.eq.s32.totalorder %s28, 0
      %p48 = por %p46, %p47
      %p49 = scmp.ne.s32.totalorder %s38, %s41
      %p50 = scmp.eq.s32.totalorder %s33, 1
      %p51 = por %p49, %p50
      %p52 = scmp.ne.s32.totalorder %s41, %s42
      %p53 = scmp.eq.s32.totalorder %s33, 0
      %p54 = por %p52, %p53
      %p55 = scmp.ne.s32.totalorder %s41, %s42
      %p56 = scmp.eq.s32.totalorder %s34, 1
      %p57 = por %p55, %p56
      %p59 = scmp.ne.s32.totalorder %s42, %s58
      %p60 = scmp.eq.s32.totalorder %s34, 0
      %p61 = por %p59, %p60
      %s63 = sadd.s32 %s62, 1
      %p66 = scmp.eq.s32.totalorder %s28, 1
      %p67 = scmp.ne.s32.totalorder %s62, %s64
      %p68 = scmp.eq.s32.totalorder %s28, 0
      %p69 = por %p67, %p68
      %p70 = scmp.ne.s32.totalorder %s62, %s64
      %p71 = scmp.eq.s32.totalorder %s33, 1
      %p72 = por %p70, %p71
      %p73 = scmp.ne.s32.totalorder %s64, %s65
      %p74 = scmp.eq.s32.totalorder %s33, 0
      %p75 = por %p73, %p74
      %p76 = scmp.ne.s32.totalorder %s64, %s65
      %p77 = scmp.eq.s32.totalorder %s34, 1
      %p78 = por %p76, %p77
      %p80 = scmp.ne.s32.totalorder %s65, %s79
      %p81 = scmp.eq.s32.totalorder %s34, 0
      %p82 = por %p80, %p81
      %s84 = sadd.s32 %s83, 1
      %p87 = scmp.eq.s32.totalorder %s28, 1
      %p88 = scmp.ne.s32.totalorder %s83, %s85
      %p89 = scmp.eq.s32.totalorder %s28, 0
      %p90 = por %p88, %p89
      %p91 = scmp.ne.s32.totalorder %s83, %s85
      %p92 = scmp.eq.s32.totalorder %s33, 1
      %p93 = por %p91, %p92
      %p94 = scmp.ne.s32.totalorder %s85, %s86
      %p95 = scmp.eq.s32.totalorder %s33, 0
      %p96 = por %p94, %p95
      %p97 = scmp.ne.s32.totalorder %s85, %s86
      %p98 = scmp.eq.s32.totalorder %s34, 1
      %p99 = por %p97, %p98
      %p101 = scmp.ne.s32.totalorder %s86, %s100
      %p102 = scmp.eq.s32.totalorder %s34, 0
      %p103 = por %p101, %p102
      %s105 = sadd.s32 %s104, 1
      %p108 = scmp.eq.s32.totalorder %s28, 1
      %p109 = scmp.ne.s32.totalorder %s104, %s106
      %p110 = scmp.eq.s32.totalorder %s28, 0
      %p111 = por %p109, %p110
      %p112 = scmp.ne.s32.totalorder %s104, %s106
      %p113 = scmp.eq.s32.totalorder %s33, 1
      %p114 = por %p112, %p113
      %p115 = scmp.ne.s32.totalorder %s106, %s107
      %p116 = scmp.eq.s32.totalorder %s33, 0
      %p117 = por %p115, %p116
      %p118 = scmp.ne.s32.totalorder %s106, %s107
      %p119 = scmp.eq.s32.totalorder %s34, 1
      %p120 = por %p118, %p119
      %p122 = scmp.ne.s32.totalorder %s107, %s121
      %p123 = scmp.eq.s32.totalorder %s34, 0
      %p124 = por %p122, %p123
      %s126 = sadd.s32 %s125, 1
      %p129 = scmp.eq.s32.totalorder %s28, 1
      %p130 = scmp.ne.s32.totalorder %s125, %s127
      %p131 = scmp.eq.s32.totalorder %s28, 0
      %p132 = por %p130, %p131
      %p133 = scmp.ne.s32.totalorder %s125, %s127
      %p134 = scmp.eq.s32.totalorder %s33, 1
      %p135 = por %p133, %p134
      %p136 = scmp.ne.s32.totalorder %s127, %s128
      %p137 = scmp.eq.s32.totalorder %s33, 0
      %p138 = por %p136, %p137
      %p139 = scmp.ne.s32.totalorder %s127, %s128
      %p140 = scmp.eq.s32.totalorder %s34, 1
      %p141 = por %p139, %p140
      %p143 = scmp.ne.s32.totalorder %s128, %s142
      %p144 = scmp.eq.s32.totalorder %s34, 0
      %p145 = por %p143, %p144
      %s147 = sadd.s32 %s146, 1
      %p150 = scmp.eq.s32.totalorder %s28, 1
      %p151 = scmp.ne.s32.totalorder %s146, %s148
      %p152 = scmp.eq.s32.totalorder %s28, 0
      %p153 = por %p151, %p152
      %p154 = scmp.ne.s32.totalorder %s146, %s148
      %p155 = scmp.eq.s32.totalorder %s33, 1
      %p156 = por %p154, %p155
      %p157 = scmp.ne.s32.totalorder %s148, %s149
      %p158 = scmp.eq.s32.totalorder %s33, 0
      %p159 = por %p157, %p158
      %p160 = scmp.ne.s32.totalorder %s148, %s149
      %p161 = scmp.eq.s32.totalorder %s34, 1
      %p162 = por %p160, %p161
      %p164 = scmp.ne.s32.totalorder %s149, %s163
      %p165 = scmp.eq.s32.totalorder %s34, 0
      %p166 = por %p164, %p165
      %s168 = sadd.s32 %s167, 1
      %p171 = scmp.eq.s32.totalorder %s28, 1
      %p172 = scmp.ne.s32.totalorder %s167, %s169
      %p173 = scmp.eq.s32.totalorder %s28, 0
      %p174 = por %p172, %p173
      %p175 = scmp.ne.s32.totalorder %s167, %s169
      %p176 = scmp.eq.s32.totalorder %s33, 1
      %p177 = por %p175, %p176
      %p178 = scmp.ne.s32.totalorder %s169, %s170
      %p179 = scmp.eq.s32.totalorder %s33, 0
      %p180 = por %p178, %p179
      %p181 = scmp.ne.s32.totalorder %s169, %s170
      %p182 = scmp.eq.s32.totalorder %s34, 1
      %p183 = por %p181, %p182
      %p185 = scmp.ne.s32.totalorder %s170, %s184
      %p186 = scmp.eq.s32.totalorder %s34, 0
      %p187 = por %p185, %p186
      %s189 = sadd.s32 %s188, 1
      %p192 = scmp.eq.s32.totalorder %s28, 1
      %p193 = scmp.ne.s32.totalorder %s188, %s190
      %p194 = scmp.eq.s32.totalorder %s28, 0
      %p195 = por %p193, %p194
      %p196 = scmp.ne.s32.totalorder %s188, %s190
      %p197 = scmp.eq.s32.totalorder %s33, 1
      %p198 = por %p196, %p197
      %p199 = scmp.ne.s32.totalorder %s190, %s191
      %p200 = scmp.eq.s32.totalorder %s33, 0
      %p201 = por %p199, %p200
      %p202 = scmp.ne.s32.totalorder %s190, %s191
      %p203 = scmp.eq.s32.totalorder %s34, 1
      %p204 = por %p202, %p203
      %p206 = scmp.ne.s32.totalorder %s191, %s205
      %p207 = scmp.eq.s32.totalorder %s34, 0
      %p208 = por %p206, %p207
      %s210 = sadd.s32 %s209, 1
      %p213 = scmp.eq.s32.totalorder %s28, 1
      %p214 = scmp.ne.s32.totalorder %s209, %s211
      %p215 = scmp.eq.s32.totalorder %s28, 0
      %p216 = por %p214, %p215
      %p217 = scmp.ne.s32.totalorder %s209, %s211
      %p218 = scmp.eq.s32.totalorder %s33, 1
      %p219 = por %p217, %p218
      %p220 = scmp.ne.s32.totalorder %s211, %s212
      %p221 = scmp.eq.s32.totalorder %s33, 0
      %p222 = por %p220, %p221
      %p223 = scmp.ne.s32.totalorder %s211, %s212
      %p224 = scmp.eq.s32.totalorder %s34, 1
      %p225 = por %p223, %p224
      %p227 = scmp.ne.s32.totalorder %s212, %s226
      %p228 = scmp.eq.s32.totalorder %s34, 0
      %p229 = por %p227, %p228
      %s231 = sadd.s32 %s230, 1
      %p234 = scmp.eq.s32.totalorder %s28, 1
      %p235 = scmp.ne.s32.totalorder %s230, %s232
      %p236 = scmp.eq.s32.totalorder %s28, 0
      %p237 = por %p235, %p236
      %p238 = scmp.ne.s32.totalorder %s230, %s232
      %p239 = scmp.eq.s32.totalorder %s33, 1
      %p240 = por %p238, %p239
      %p241 = scmp.ne.s32.totalorder %s232, %s233
      %p242 = scmp.eq.s32.totalorder %s33, 0
      %p243 = por %p241, %p242
      %p244 = scmp.ne.s32.totalorder %s232, %s233
      %p245 = scmp.eq.s32.totalorder %s34, 1
      %p246 = por %p244, %p245
      %p248 = scmp.ne.s32.totalorder %s233, %s247
      %p249 = scmp.eq.s32.totalorder %s34, 0
      %p250 = por %p248, %p249
      %s251 = ssub.s32 %s28, %s35
      %p252 = scmp.eq.s32.totalorder %s251, 0
      %s254 = sadd.s32 %s253, 1
      %s255 = scalar_select %p252, %s253, %s254
      %p258 = pneg %p252
      %p259 = scmp.eq.s32.totalorder %s28, 1
      %p260 = por %p258, %p259
      %p261 = scmp.ne.s32.totalorder %s253, %s256
      %p262 = scmp.eq.s32.totalorder %s28, 0
      %p263 = por %p261, %p262
      %p264 = scmp.ne.s32.totalorder %s253, %s256
      %p265 = scmp.eq.s32.totalorder %s33, 1
      %p266 = por %p264, %p265
      %p267 = scmp.ne.s32.totalorder %s256, %s257
      %p268 = scmp.eq.s32.totalorder %s33, 0
      %p269 = por %p267, %p268
      %p270 = scmp.ne.s32.totalorder %s256, %s257
      %p271 = scmp.eq.s32.totalorder %s34, 1
      %p272 = por %p270, %p271
      %p274 = scmp.ne.s32.totalorder %s257, %s273
      %p275 = scmp.eq.s32.totalorder %s34, 0
      %p276 = por %p274, %p275
      %s277 = ssub.s32 %s28, %s35
      %p278 = scmp.eq.s32.totalorder %s277, 0
      %s280 = sadd.s32 %s279, 1
      %s281 = scalar_select %p278, %s279, %s280
      %p284 = pneg %p278
      %p285 = scmp.eq.s32.totalorder %s28, 1
      %p286 = por %p284, %p285
      %p287 = scmp.ne.s32.totalorder %s279, %s282
      %p288 = scmp.eq.s32.totalorder %s28, 0
      %p289 = por %p287, %p288
      %p290 = scmp.ne.s32.totalorder %s279, %s282
      %p291 = scmp.eq.s32.totalorder %s33, 1
      %p292 = por %p290, %p291
      %p293 = scmp.ne.s32.totalorder %s282, %s283
      %p294 = scmp.eq.s32.totalorder %s33, 0
      %p295 = por %p293, %p294
      %p296 = scmp.ne.s32.totalorder %s282, %s283
      %p297 = scmp.eq.s32.totalorder %s34, 1
      %p298 = por %p296, %p297
      %p300 = scmp.ne.s32.totalorder %s283, %s299
      %p301 = scmp.eq.s32.totalorder %s34, 0
      %p302 = por %p300, %p301
      %s303 = ssub.s32 %s28, %s35
      %p304 = scmp.eq.s32.totalorder %s303, 0
      %s306 = sadd.s32 %s305, 1
      %s307 = scalar_select %p304, %s305, %s306
      %p310 = pneg %p304
      %p311 = scmp.eq.s32.totalorder %s28, 1
      %p312 = por %p310, %p311
      %p313 = scmp.ne.s32.totalorder %s305, %s308
      %p314 = scmp.eq.s32.totalorder %s28, 0
      %p315 = por %p313, %p314
      %p316 = scmp.ne.s32.totalorder %s305, %s308
      %p317 = scmp.eq.s32.totalorder %s33, 1
      %p318 = por %p316, %p317
      %p319 = scmp.ne.s32.totalorder %s308, %s309
      %p320 = scmp.eq.s32.totalorder %s33, 0
      %p321 = por %p319, %p320
      %p322 = scmp.ne.s32.totalorder %s308, %s309
      %p323 = scmp.eq.s32.totalorder %s34, 1
      %p324 = por %p322, %p323
      %p326 = scmp.ne.s32.totalorder %s309, %s325
      %p327 = scmp.eq.s32.totalorder %s34, 0
      %p328 = por %p326, %p327
      %s329 = ssub.s32 %s28, %s35
      %p330 = scmp.eq.s32.totalorder %s329, 0
      %s332 = sadd.s32 %s331, 1
      %s333 = scalar_select %p330, %s331, %s332
      %p336 = pneg %p330
      %p337 = scmp.eq.s32.totalorder %s28, 1
      %p338 = por %p336, %p337
      %p339 = scmp.ne.s32.totalorder %s331, %s334
      %p340 = scmp.eq.s32.totalorder %s28, 0
      %p341 = por %p339, %p340
      %p342 = scmp.ne.s32.totalorder %s331, %s334
      %p343 = scmp.eq.s32.totalorder %s33, 1
      %p344 = por %p342, %p343
      %p345 = scmp.ne.s32.totalorder %s334, %s335
      %p346 = scmp.eq.s32.totalorder %s33, 0
      %p347 = por %p345, %p346
      %p348 = scmp.ne.s32.totalorder %s334, %s335
      %p349 = scmp.eq.s32.totalorder %s34, 1
      %p350 = por %p348, %p349
      %p352 = scmp.ne.s32.totalorder %s335, %s351
      %p353 = scmp.eq.s32.totalorder %s34, 0
      %p354 = por %p352, %p353
      %s355 = ssub.s32 %s28, %s35
      %p356 = scmp.eq.s32.totalorder %s355, 0
      %s358 = sadd.s32 %s357, 1
      %s359 = scalar_select %p356, %s357, %s358
      %p362 = pneg %p356
      %p363 = scmp.eq.s32.totalorder %s28, 1
      %p364 = por %p362, %p363
      %p365 = scmp.ne.s32.totalorder %s357, %s360
      %p366 = scmp.eq.s32.totalorder %s28, 0
      %p367 = por %p365, %p366
      %p368 = scmp.ne.s32.totalorder %s357, %s360
      %p369 = scmp.eq.s32.totalorder %s33, 1
      %p370 = por %p368, %p369
      %p371 = scmp.ne.s32.totalorder %s360, %s361
      %p372 = scmp.eq.s32.totalorder %s33, 0
      %p373 = por %p371, %p372
      %p374 = scmp.ne.s32.totalorder %s360, %s361
      %p375 = scmp.eq.s32.totalorder %s34, 1
      %p376 = por %p374, %p375
      %p378 = scmp.ne.s32.totalorder %s361, %s377
      %p379 = scmp.eq.s32.totalorder %s34, 0
      %p380 = por %p378, %p379
      %s381 = ssub.s32 %s28, %s35
      %p382 = scmp.eq.s32.totalorder %s381, 0
      %s384 = sadd.s32 %s383, 1
      %s385 = scalar_select %p382, %s383, %s384
      %p388 = pneg %p382
      %p389 = scmp.eq.s32.totalorder %s28, 1
      %p390 = por %p388, %p389
      %p391 = scmp.ne.s32.totalorder %s383, %s386
      %p392 = scmp.eq.s32.totalorder %s28, 0
      %p393 = por %p391, %p392
      %p394 = scmp.ne.s32.totalorder %s383, %s386
      %p395 = scmp.eq.s32.totalorder %s33, 1
      %p396 = por %p394, %p395
      %p397 = scmp.ne.s32.totalorder %s386, %s387
      %p398 = scmp.eq.s32.totalorder %s33, 0
      %p399 = por %p397, %p398
      %p400 = scmp.ne.s32.totalorder %s386, %s387
      %p401 = scmp.eq.s32.totalorder %s34, 1
      %p402 = por %p400, %p401
      %p404 = scmp.ne.s32.totalorder %s387, %s403
      %p405 = scmp.eq.s32.totalorder %s34, 0
      %p406 = por %p404, %p405
      %s407 = ssub.s32 %s28, %s35
      %p408 = scmp.eq.s32.totalorder %s407, 0
      %s410 = sadd.s32 %s409, 1
      %s411 = scalar_select %p408, %s409, %s410
      %p414 = pneg %p408
      %p415 = scmp.eq.s32.totalorder %s28, 1
      %p416 = por %p414, %p415
      %p417 = scmp.ne.s32.totalorder %s409, %s412
      %p418 = scmp.eq.s32.totalorder %s28, 0
      %p419 = por %p417, %p418
      %p420 = scmp.ne.s32.totalorder %s409, %s412
      %p421 = scmp.eq.s32.totalorder %s33, 1
      %p422 = por %p420, %p421
      %p423 = scmp.ne.s32.totalorder %s412, %s413
      %p424 = scmp.eq.s32.totalorder %s33, 0
      %p425 = por %p423, %p424
      %p426 = scmp.ne.s32.totalorder %s412, %s413
      %p427 = scmp.eq.s32.totalorder %s34, 1
      %p428 = por %p426, %p427
      %p430 = scmp.ne.s32.totalorder %s413, %s429
      %p431 = scmp.eq.s32.totalorder %s34, 0
      %p432 = por %p430, %p431
      %s433 = ssub.s32 %s28, %s35
      %p434 = scmp.eq.s32.totalorder %s433, 0
      %s436 = sadd.s32 %s435, 1
      %s437 = scalar_select %p434, %s435, %s436
      %p440 = pneg %p434
      %p441 = scmp.eq.s32.totalorder %s28, 1
      %p442 = por %p440, %p441
      %p443 = scmp.ne.s32.totalorder %s435, %s438
      %p444 = scmp.eq.s32.totalorder %s28, 0
      %p445 = por %p443, %p444
      %p446 = scmp.ne.s32.totalorder %s435, %s438
      %p447 = scmp.eq.s32.totalorder %s33, 1
      %p448 = por %p446, %p447
      %p449 = scmp.ne.s32.totalorder %s438, %s439
      %p450 = scmp.eq.s32.totalorder %s33, 0
      %p451 = por %p449, %p450
      %p452 = scmp.ne.s32.totalorder %s438, %s439
      %p453 = scmp.eq.s32.totalorder %s34, 1
      %p454 = por %p452, %p453
      %p456 = scmp.ne.s32.totalorder %s439, %s455
      %p457 = scmp.eq.s32.totalorder %s34, 0
      %p458 = por %p456, %p457
      %p459 = scmp.le.s32.totalorder 1, %s28
      %p460 = scmp.lt.s32.totalorder %s28, 3
      %p461 = pnand %p459, %p460
      %p462 = pneg %p461
      // Predicated region
      $region9: #{loci_forward.1} parent=5 // pred_check
        _
      $region10: #{loci_forward.1} parent=5 // pred_check_branch
        %464 = sbr.rel (%p461) target = $region12
      $region11: #{loci_forward.1} parent=5 // pred_region
        %s465 = ssub.s32 %s28, 1
        // Predicated region
        $region13: #{loci_forward.1} parent=11 // pred_check
          %p466 = pneg %p75
        $region14: #{loci_forward.1} parent=11 // pred_check_branch
          %468 = sbr.rel (%p466) target = $region16
        $region15: #{loci_forward.1} parent=11 // pred_region
          _
        $region16: #{loci_forward.1} parent=11 // pred_fallthru
          _
        // Predicated region
        $region17: #{loci_forward.1} parent=11 // pred_check
          %p469 = pneg %p96
        $region18: #{loci_forward.1} parent=11 // pred_check_branch
          %471 = sbr.rel (%p469) target = $region20
        $region19: #{loci_forward.1} parent=11 // pred_region
          _
        $region20: #{loci_forward.1} parent=11 // pred_fallthru
          _
        // Predicated region
        $region21: #{loci_forward.1} parent=11 // pred_check
          %p472 = pneg %p117
        $region22: #{loci_forward.1} parent=11 // pred_check_branch
          %474 = sbr.rel (%p472) target = $region24
        $region23: #{loci_forward.1} parent=11 // pred_region
          _
        $region24: #{loci_forward.1} parent=11 // pred_fallthru
          _
        // Predicated region
        $region25: #{loci_forward.1} parent=11 // pred_check
          %p475 = pneg %p138
        $region26: #{loci_forward.1} parent=11 // pred_check_branch
          %477 = sbr.rel (%p475) target = $region28
        $region27: #{loci_forward.1} parent=11 // pred_region
          %s479 = ssub.s32 64, 64
          %480 = vsyncadd [#allocation3], %s479
          %s482 = sshll.u32 [#allocation2], 4
          %s483 = int_to_ptr.vmem [resolvable:$true] %s482
          %485 = dma.hbm_to_vmem [thread:$0]  %s4, 64, %s483, [#allocation3]
        $region28: #{loci_forward.1} parent=11 // pred_fallthru
          _
        // Predicated region
        $region29: #{loci_forward.1} parent=11 // pred_check
          %p486 = pneg %p159
        $region30: #{loci_forward.1} parent=11 // pred_check_branch
          %488 = sbr.rel (%p486) target = $region32
        $region31: #{loci_forward.1} parent=11 // pred_region
          _
        $region32: #{loci_forward.1} parent=11 // pred_fallthru
          _
        // Predicated region
        $region33: #{loci_forward.1} parent=11 // pred_check
          %p489 = pneg %p180
        $region34: #{loci_forward.1} parent=11 // pred_check_branch
          %491 = sbr.rel (%p489) target = $region36
        $region35: #{loci_forward.1} parent=11 // pred_region
          _
        $region36: #{loci_forward.1} parent=11 // pred_fallthru
          _
        // Predicated region
        $region37: #{loci_forward.1} parent=11 // pred_check
          %p492 = pneg %p201
        $region38: #{loci_forward.1} parent=11 // pred_check_branch
          %494 = sbr.rel (%p492) target = $region40
        $region39: #{loci_forward.1} parent=11 // pred_region
          _
        $region40: #{loci_forward.1} parent=11 // pred_fallthru
          _
        // Predicated region
        $region41: #{loci_forward.1} parent=11 // pred_check
          %p495 = pneg %p222
        $region42: #{loci_forward.1} parent=11 // pred_check_branch
          %497 = sbr.rel (%p495) target = $region44
        $region43: #{loci_forward.1} parent=11 // pred_region
          _
        $region44: #{loci_forward.1} parent=11 // pred_fallthru
          _
        // Predicated region
        $region45: #{loci_forward.1} parent=11 // pred_check
          %p498 = pneg %p243
        $region46: #{loci_forward.1} parent=11 // pred_check_branch
          %500 = sbr.rel (%p498) target = $region48
        $region47: #{loci_forward.1} parent=11 // pred_region
          _
        $region48: #{loci_forward.1} parent=11 // pred_fallthru
          _
      $region12: #{loci_forward.1} parent=5 // pred_fallthru
        _
      %p501 = scmp.lt.s32.totalorder %s28, 2
      // Predicated region
      $region49: #{loci_forward.1} parent=5 // pred_check
        %p502 = pneg %p501
      $region50: #{loci_forward.1} parent=5 // pred_check_branch
        %504 = sbr.rel (%p502) target = $region52
      $region51: #{loci_forward.1} parent=5 // pred_region
        // Predicated region
        $region53: #{loci_forward.1} parent=51 // pred_check
          %p505 = pneg %p48
        $region54: #{loci_forward.1} parent=51 // pred_check_branch
          %507 = sbr.rel (%p505) target = $region56
        $region55: #{loci_forward.1} parent=51 // pred_region
          %p508 = scmp.lt.s32.totalorder %s28, 1
          %s509 = scalar_select %p508, %s28, 1
          %s510 = smul.addr %s509, 2
          %s511 = smul.addr %s510, 4
          %s512 = scalar_lea.vmem %s0, %s511
        $region56: #{loci_forward.1} parent=51 // pred_fallthru
          _
      $region52: #{loci_forward.1} parent=5 // pred_fallthru
        _
      %p513 = scmp.le.s32.totalorder 1, %s28
      %p514 = scmp.lt.s32.totalorder %s28, 3
      %p515 = pnand %p513, %p514
      %p516 = pneg %p515
      // Predicated region
      $region57: #{loci_forward.1} parent=5 // pred_check
        _
      $region58: #{loci_forward.1} parent=5 // pred_check_branch
        %518 = sbr.rel (%p515) target = $region60
      $region59: #{loci_forward.1} parent=5 // pred_region
        %s519 = ssub.s32 %s28, 1
        // Predicated region
        $region61: #{loci_forward.1} parent=59 // pred_check
          %p520 = pneg %p138
        $region62: #{loci_forward.1} parent=59 // pred_check_branch
          %522 = sbr.rel (%p520) target = $region64
        $region63: #{loci_forward.1} parent=59 // pred_region
          %523 = dma.done [#allocation3], 64
        $region64: #{loci_forward.1} parent=59 // pred_fallthru
          _
        %p524 = scmp.lt.s32.totalorder %s33, 1
        %s525 = scalar_select %p524, %s33, 1
        %s526 = smul.addr %s525, 2
        %s527 = smul.addr %s526, 4
        %s528 = scalar_lea.vmem %s0, %s527
        %p529 = pneg %p54
        %p530 = pneg %p51
        %p531 = pneg %p75
        %p532 = pneg %p72
        %p533 = pneg %p96
        %p534 = pneg %p93
        %p535 = pneg %p117
        %p536 = pneg %p114
        %p537 = pneg %p138
        %p538 = pneg %p135
        %p539 = pneg %p159
        %p540 = pneg %p156
        %p541 = pneg %p180
        %p542 = pneg %p177
        %p543 = pneg %p201
        %p544 = pneg %p198
        %p545 = pneg %p222
        %p546 = pneg %p219
        %p547 = pneg %p243
        %p548 = pneg %p240
        %p549 = pneg %p269
        %p550 = pneg %p266
        %p551 = scmp.lt.s32.totalorder %s33, 1
        %s552 = scalar_select %p551, %s33, 1
        %s553 = smul.addr %s552, 2
        %s554 = smul.addr %s553, 4
        %s555 = scalar_lea.vmem %s10, %s554
        %p556 = pneg %p295
        %p557 = pneg %p292
        %p558 = scmp.lt.s32.totalorder %s33, 1
        %s559 = scalar_select %p558, %s33, 1
        %s560 = smul.addr %s559, 2
        %s561 = smul.addr %s560, 4
        %s562 = scalar_lea.vmem %s11, %s561
        %p563 = pneg %p321
        %p564 = pneg %p318
        %p565 = scmp.lt.s32.totalorder %s33, 1
        %s566 = scalar_select %p565, %s33, 1
        %s567 = smul.addr %s566, 2
        %s568 = scalar_lea.vmem %s12, %s567
        %p569 = pneg %p347
        %p570 = pneg %p344
        %p571 = scmp.lt.s32.totalorder %s33, 1
        %s572 = scalar_select %p571, %s33, 1
        %s573 = smul.addr %s572, 6
        %s574 = smul.addr %s573, 4
        %s575 = scalar_lea.vmem %s13, %s574
        %p576 = pneg %p373
        %p577 = pneg %p370
        %p578 = scmp.lt.s32.totalorder %s33, 1
        %s579 = scalar_select %p578, %s33, 1
        %s580 = smul.addr %s579, 4
        %s581 = scalar_lea.vmem %s14, %s580
        %p582 = pneg %p399
        %p583 = pneg %p396
        %p584 = scmp.lt.s32.totalorder %s33, 1
        %s585 = scalar_select %p584, %s33, 1
        %s586 = smul.addr %s585, 4
        %s587 = scalar_lea.vmem %s15, %s586
        %p588 = pneg %p425
        %p589 = pneg %p422
        %p590 = scmp.lt.s32.totalorder %s33, 1
        %s591 = scalar_select %p590, %s33, 1
        %s592 = smul.addr %s591, 4
        %s593 = scalar_lea.vmem %s16, %s592
        %p594 = pneg %p451
        %p595 = pneg %p448
        %s596 = sand.u32 %s438, 1
        %s597 = scalar_lea.sflag [#allocation4], %s596
        %s598 = sand.u32 %s438, 1
        %s599 = scalar_lea.vmem [#allocation5], %s598
        %p600 = scmp.lt.s32.totalorder %s33, 1
        %s601 = scalar_select %p600, %s33, 1
        %s602 = smul.addr %s601, 2
        %s603 = smul.addr %s602, 4
        %s604 = scalar_lea.vmem %s0, %s603
        %p605 = scmp.lt.s32.totalorder %s33, 1
        %s606 = scalar_select %p605, %s33, 1
        %s607 = smul.addr %s606, 2
        %s608 = smul.addr %s607, 4
        %s609 = scalar_lea.vmem %s10, %s608
        %p610 = scmp.lt.s32.totalorder %s33, 1
        %s611 = scalar_select %p610, %s33, 1
        %s612 = smul.addr %s611, 2
        %s613 = smul.addr %s612, 4
        %s614 = scalar_lea.vmem %s11, %s613
        %p615 = scmp.lt.s32.totalorder %s33, 1
        %s616 = scalar_select %p615, %s33, 1
        %s617 = smul.addr %s616, 2
        %s618 = scalar_lea.vmem %s12, %s617
        %p619 = scmp.lt.s32.totalorder %s33, 1
        %s620 = scalar_select %p619, %s33, 1
        %s621 = smul.addr %s620, 6
        %s622 = smul.addr %s621, 4
        %s623 = scalar_lea.vmem %s13, %s622
        %p624 = scmp.lt.s32.totalorder %s33, 1
        %s625 = scalar_select %p624, %s33, 1
        %s626 = smul.addr %s625, 4
        %s627 = scalar_lea.vmem %s14, %s626
        %p628 = scmp.lt.s32.totalorder %s33, 1
        %s629 = scalar_select %p628, %s33, 1
        %s630 = smul.addr %s629, 4
        %s631 = scalar_lea.vmem %s15, %s630
        %p632 = scmp.lt.s32.totalorder %s33, 1
        %s633 = scalar_select %p632, %s33, 1
        %s634 = smul.addr %s633, 4
        %s635 = scalar_lea.vmem %s16, %s634
        %v637 = vld [vmem:[%s604] sm:$0x77]
        %v638 = vld [vmem:[%s1] sm:$0x77]
        %v639 = vld [vmem:[%s2] sm:$0x3]
        %v640 = vld [vmem:[%s5] sm:$0xff]
        %v641 = vld [vmem:[%s5 + $0x8] sm:$0xff]
        %v642 = vld [vmem:[%s5 + $0x10] sm:$0xff]
        %v643 = vld [vmem:[%s5 + $0x18] sm:$0xff]
        %v644 = vld [vmem:[%s5 + $0x20] sm:$0xff]
        %v645 = vld [vmem:[%s5 + $0x28] sm:$0xff]
        %v646 = vld [vmem:[%s5 + $0x30] sm:$0xff]
        %v647 = vld [vmem:[%s5 + $0x38] sm:$0xff]
        %v648 = vld [vmem:[%s5 + $0x40] sm:$0xff]
        %v649 = vld [vmem:[%s5 + $0x48] sm:$0xff]
        %v650 = vld [vmem:[%s5 + $0x50] sm:$0xff]
        %v651 = vld [vmem:[%s5 + $0x58] sm:$0xff]
        %v652 = vld [vmem:[%s5 + $0x60] sm:$0xff]
        %v653 = vld [vmem:[%s5 + $0x68] sm:$0xff]
        %v654 = vld [vmem:[%s5 + $0x70] sm:$0xff]
        %v655 = vld [vmem:[%s5 + $0x78] sm:$0xff]
        %v656 = vsub.f32 %v637, %v638
        %v657 = vmul.f32 %v656, %v656
        %v659 = vcombine.high %v657, %v657
        %vm661 = vcmask 1042432
        %v662 = vsel %vm661, %v657, 0.0
        %v663 = vrot.slane %v662, 4
        %v664 = vadd.f32 %v662, %v663
        %v665 = vrot.slane %v664, 2
        %v666 = vadd.f32 %v664, %v665
        %v667 = vrot.slane %v666, 1
        %v668 = vadd.f32 %v666, %v667
        %v669 = vsel %vm661, %v659, 0.0
        %v670 = vrot.slane %v669, 4
        %v671 = vadd.f32 %v669, %v670
        %v672 = vrot.slane %v671, 2
        %v673 = vadd.f32 %v671, %v672
        %v674 = vrot.slane %v673, 1
        %v675 = vadd.f32 %v673, %v674
        %v676 = vrcp.pop 3.0
        %v677 = vmul.f32 %v668, %v676
        %v678 = vmul.f32 %v675, %v676
        %v679 = vrsqrt.pop %v677
        %v680 = vmul.f32 %v677, %v679
        %vm681 = vcmp.eq.f32.partialorder %v677, inf
        %v682 = vsel %vm681, %v677, %v680
        %vm683 = vcmp.eq.f32.partialorder %v677, 0.0
        %v684 = vand.u32 %v677, 2147483648
        %v685 = vsel %vm683, %v684, %v682
        %v686 = vrsqrt.pop %v678
        %v687 = vmul.f32 %v678, %v686
        %vm688 = vcmp.eq.f32.partialorder %v678, inf
        %v689 = vsel %vm688, %v678, %v687
        %vm690 = vcmp.eq.f32.partialorder %v678, 0.0
        %v691 = vand.u32 %v678, 2147483648
        %v692 = vsel %vm690, %v691, %v689
        %v693 = vadd.f32 %v685, %v692
        %694 = vadd.xlane.f32.xlu0 %v693
        %v695 = vpop.xlane.xlu0 %694
        %v696 = vrcp.pop 256.0
        %v697 = vmul.f32 %v695, %v696
        %v698 = vld [vmem:[%s3] sm:$0xf]
        %v699 = vadd.f32 %v698, %v697
        %v700 = vxor.u32 %v699, 2147483648
        %v701 = vmul.f32 %v700, 1.442695
        %v702 = vpow.pop %v701
        %v703 = vadd.f32 %v702, 1.0
        %v704 = vrcp.pop %v703
        %v705 = vmul.f32 1.0, %v704
        %v706 = vld [vmem:[#allocation2] sm:$0xf]
        %v707 = vtanh.pop %v697
        %v708 = vmul.f32 %v707, 0.1
        %v709 = vadd.f32 %v708, 1.0
        %v710 = vmul.f32 %v706, %v709
        %v711 = vpack.c.bf16 %v705, %v705
        %v728 = vunpack.c.l.b16 %v640
        %v729 = vunpack.c.h.b16 %v640
        %v730 = vunpack.c.l.b16 %v641
        %v731 = vunpack.c.h.b16 %v641
        %v732 = vunpack.c.l.b16 %v642
        %v733 = vunpack.c.h.b16 %v642
        %v734 = vunpack.c.l.b16 %v643
        %v735 = vunpack.c.h.b16 %v643
        %v736 = vunpack.c.l.b16 %v644
        %v737 = vunpack.c.h.b16 %v644
        %v738 = vunpack.c.l.b16 %v645
        %v739 = vunpack.c.h.b16 %v645
        %v740 = vunpack.c.l.b16 %v646
        %v741 = vunpack.c.h.b16 %v646
        %v742 = vunpack.c.l.b16 %v647
        %v743 = vunpack.c.h.b16 %v647
        %v744 = vunpack.c.l.b16 %v648
        %v745 = vunpack.c.h.b16 %v648
        %v746 = vunpack.c.l.b16 %v649
        %v747 = vunpack.c.h.b16 %v649
        %v748 = vunpack.c.l.b16 %v650
        %v749 = vunpack.c.h.b16 %v650
        %v750 = vunpack.c.l.b16 %v651
        %v751 = vunpack.c.h.b16 %v651
        %v752 = vunpack.c.l.b16 %v652
        %v753 = vunpack.c.h.b16 %v652
        %v754 = vunpack.c.l.b16 %v653
        %v755 = vunpack.c.h.b16 %v653
        %v756 = vunpack.c.l.b16 %v654
        %v757 = vunpack.c.h.b16 %v654
        %v758 = vunpack.c.l.b16 %v655
        %v759 = vunpack.c.h.b16 %v655
        %v760 = vpack.c.b16 %v736, %v728
        %v761 = vpack.c.b16 %v737, %v729
        %v762 = vpack.c.b16 %v738, %v730
        %v763 = vpack.c.b16 %v739, %v731
        %v764 = vpack.c.b16 %v740, %v732
        %v765 = vpack.c.b16 %v741, %v733
        %v766 = vpack.c.b16 %v742, %v734
        %v767 = vpack.c.b16 %v743, %v735
        %v768 = vpack.c.b16 %v752, %v744
        %v769 = vpack.c.b16 %v753, %v745
        %v770 = vpack.c.b16 %v754, %v746
        %v771 = vpack.c.b16 %v755, %v747
        %v772 = vpack.c.b16 %v756, %v748
        %v773 = vpack.c.b16 %v757, %v749
        %v774 = vpack.c.b16 %v758, %v750
        %v775 = vpack.c.b16 %v759, %v751
        %vm792 = vcmask 261120
        %v794 = vsel %vm792, %v711, 0
        %796 = vmatprep.subr.bf16.mxu0 %v761
        %797 = vmatpush1.bf16.msra.mxu0 %v760
        %798 = vmatprep.subr.bf16.mxu0 %v769
        %799 = vmatpush1.bf16.msra.mxu0 %v768
        %800 = vmatprep.subr.bf16.mxu0 0
        %801 = vmatpush1.bf16.msra.mxu0 0
        %802 = vmatprep.subr.bf16.mxu0 0
        %803 = vmatpush1.bf16.msra.mxu0 0
        %804 = vmatprep.subr.bf16.mxu0 0
        %805 = vmatpush1.bf16.msra.mxu0 0
        %806 = vmatprep.subr.bf16.mxu0 0
        %807 = vmatpush1.bf16.msra.mxu0 0
        %808 = vmatprep.subr.bf16.mxu0 0
        %809 = vmatpush1.bf16.msra.mxu0 0
        %810 = vmatprep.subr.bf16.mxu0 0
        %811 = vmatpush1.bf16.msra.mxu0 0
        %812 = vmatprep.subr.bf16.mxu0 0
        %813 = vmatpush1.bf16.msra.mxu0 0
        %814 = vmatprep.subr.bf16.mxu0 0
        %815 = vmatpush1.bf16.msra.mxu0 0
        %816 = vmatprep.subr.bf16.mxu0 0
        %817 = vmatpush1.bf16.msra.mxu0 0
        %818 = vmatprep.subr.bf16.mxu0 0
        %819 = vmatpush1.bf16.msra.mxu0 0
        %820 = vmatprep.subr.bf16.mxu0 0
        %821 = vmatpush1.bf16.msra.mxu0 0
        %822 = vmatprep.subr.bf16.mxu0 0
        %823 = vmatpush1.bf16.msra.mxu0 0
        %824 = vmatprep.subr.bf16.mxu0 0
        %825 = vmatpush1.bf16.msra.mxu0 0
        %826 = vmatprep.subr.bf16.mxu0 0
        %827 = vmatpush1.bf16.msra.mxu0 0
        %828 = vmatprep.mubr.bf16.mxu0 0
        %829 = vmatmul.mubr.bf16.gmra.mrb[0].mxu0 %v794
        %v830 = vpop.f32.mrb[0].mxu0
        %v831 = vadd.f32 0.0, %v830
        %v832 = vpop.f32.mrb[0].mxu0
        %v833 = vadd.f32 0.0, %v832
        %v834 = vpop.f32.mrb[0].mxu0
        %v835 = vpop.f32.mrb[0].mxu0
        %836 = vdwg.mxu0
        %837 = vmatprep.subr.bf16.mxu0 %v763
        %838 = vmatpush1.bf16.msra.mxu0 %v762
        %839 = vmatprep.subr.bf16.mxu0 %v771
        %840 = vmatpush1.bf16.msra.mxu0 %v770
        %841 = vmatprep.subr.bf16.mxu0 0
        %842 = vmatpush1.bf16.msra.mxu0 0
        %843 = vmatprep.subr.bf16.mxu0 0
        %844 = vmatpush1.bf16.msra.mxu0 0
        %845 = vmatprep.subr.bf16.mxu0 0
        %846 = vmatpush1.bf16.msra.mxu0 0
        %847 = vmatprep.subr.bf16.mxu0 0
        %848 = vmatpush1.bf16.msra.mxu0 0
        %849 = vmatprep.subr.bf16.mxu0 0
        %850 = vmatpush1.bf16.msra.mxu0 0
        %851 = vmatprep.subr.bf16.mxu0 0
        %852 = vmatpush1.bf16.msra.mxu0 0
        %853 = vmatprep.subr.bf16.mxu0 0
        %854 = vmatpush1.bf16.msra.mxu0 0
        %855 = vmatprep.subr.bf16.mxu0 0
        %856 = vmatpush1.bf16.msra.mxu0 0
        %857 = vmatprep.subr.bf16.mxu0 0
        %858 = vmatpush1.bf16.msra.mxu0 0
        %859 = vmatprep.subr.bf16.mxu0 0
        %860 = vmatpush1.bf16.msra.mxu0 0
        %861 = vmatprep.subr.bf16.mxu0 0
        %862 = vmatpush1.bf16.msra.mxu0 0
        %863 = vmatprep.subr.bf16.mxu0 0
        %864 = vmatpush1.bf16.msra.mxu0 0
        %865 = vmatprep.subr.bf16.mxu0 0
        %866 = vmatpush1.bf16.msra.mxu0 0
        %867 = vmatprep.subr.bf16.mxu0 0
        %868 = vmatpush1.bf16.msra.mxu0 0
        %869 = vmatprep.mubr.bf16.mxu0 0
        %870 = vmatmul.mubr.bf16.gmra.mrb[0].mxu0 %v794
        %v871 = vpop.f32.mrb[0].mxu0
        %v872 = vadd.f32 0.0, %v871
        %v873 = vpop.f32.mrb[0].mxu0
        %v874 = vadd.f32 0.0, %v873
        %v875 = vpop.f32.mrb[0].mxu0
        %v876 = vpop.f32.mrb[0].mxu0
        %877 = vdwg.mxu0
        %878 = vmatprep.subr.bf16.mxu0 %v765
        %879 = vmatpush1.bf16.msra.mxu0 %v764
        %880 = vmatprep.subr.bf16.mxu0 %v773
        %881 = vmatpush1.bf16.msra.mxu0 %v772
        %882 = vmatprep.subr.bf16.mxu0 0
        %883 = vmatpush1.bf16.msra.mxu0 0
        %884 = vmatprep.subr.bf16.mxu0 0
        %885 = vmatpush1.bf16.msra.mxu0 0
        %886 = vmatprep.subr.bf16.mxu0 0
        %887 = vmatpush1.bf16.msra.mxu0 0
        %888 = vmatprep.subr.bf16.mxu0 0
        %889 = vmatpush1.bf16.msra.mxu0 0
        %890 = vmatprep.subr.bf16.mxu0 0
        %891 = vmatpush1.bf16.msra.mxu0 0
        %892 = vmatprep.subr.bf16.mxu0 0
        %893 = vmatpush1.bf16.msra.mxu0 0
        %894 = vmatprep.subr.bf16.mxu0 0
        %895 = vmatpush1.bf16.msra.mxu0 0
        %896 = vmatprep.subr.bf16.mxu0 0
        %897 = vmatpush1.bf16.msra.mxu0 0
        %898 = vmatprep.subr.bf16.mxu0 0
        %899 = vmatpush1.bf16.msra.mxu0 0
        %900 = vmatprep.subr.bf16.mxu0 0
        %901 = vmatpush1.bf16.msra.mxu0 0
        %902 = vmatprep.subr.bf16.mxu0 0
        %903 = vmatpush1.bf16.msra.mxu0 0
        %904 = vmatprep.subr.bf16.mxu0 0
        %905 = vmatpush1.bf16.msra.mxu0 0
        %906 = vmatprep.subr.bf16.mxu0 0
        %907 = vmatpush1.bf16.msra.mxu0 0
        %908 = vmatprep.subr.bf16.mxu0 0
        %909 = vmatpush1.bf16.msra.mxu0 0
        %910 = vmatprep.mubr.bf16.mxu0 0
        %911 = vmatmul.mubr.bf16.gmra.mrb[0].mxu0 %v794
        %v912 = vpop.f32.mrb[0].mxu0
        %v913 = vadd.f32 0.0, %v912
        %v914 = vpop.f32.mrb[0].mxu0
        %v915 = vadd.f32 0.0, %v914
        %v916 = vpop.f32.mrb[0].mxu0
        %v917 = vpop.f32.mrb[0].mxu0
        %918 = vdwg.mxu0
        %919 = vmatprep.subr.bf16.mxu0 %v767
        %920 = vmatpush1.bf16.msra.mxu0 %v766
        %921 = vmatprep.subr.bf16.mxu0 %v775
        %922 = vmatpush1.bf16.msra.mxu0 %v774
        %923 = vmatprep.subr.bf16.mxu0 0
        %924 = vmatpush1.bf16.msra.mxu0 0
        %925 = vmatprep.subr.bf16.mxu0 0
        %926 = vmatpush1.bf16.msra.mxu0 0
        %927 = vmatprep.subr.bf16.mxu0 0
        %928 = vmatpush1.bf16.msra.mxu0 0
        %929 = vmatprep.subr.bf16.mxu0 0
        %930 = vmatpush1.bf16.msra.mxu0 0
        %931 = vmatprep.subr.bf16.mxu0 0
        %932 = vmatpush1.bf16.msra.mxu0 0
        %933 = vmatprep.subr.bf16.mxu0 0
        %934 = vmatpush1.bf16.msra.mxu0 0
        %935 = vmatprep.subr.bf16.mxu0 0
        %936 = vmatpush1.bf16.msra.mxu0 0
        %937 = vmatprep.subr.bf16.mxu0 0
        %938 = vmatpush1.bf16.msra.mxu0 0
        %939 = vmatprep.subr.bf16.mxu0 0
        %940 = vmatpush1.bf16.msra.mxu0 0
        %941 = vmatprep.subr.bf16.mxu0 0
        %942 = vmatpush1.bf16.msra.mxu0 0
        %943 = vmatprep.subr.bf16.mxu0 0
        %944 = vmatpush1.bf16.msra.mxu0 0
        %945 = vmatprep.subr.bf16.mxu0 0
        %946 = vmatpush1.bf16.msra.mxu0 0
        %947 = vmatprep.subr.bf16.mxu0 0
        %948 = vmatpush1.bf16.msra.mxu0 0
        %949 = vmatprep.subr.bf16.mxu0 0
        %950 = vmatpush1.bf16.msra.mxu0 0
        %951 = vmatprep.mubr.bf16.mxu0 0
        %952 = vmatmul.mubr.bf16.gmra.mrb[0].mxu0 %v794
        %v953 = vpop.f32.mrb[0].mxu0
        %v954 = vadd.f32 0.0, %v953
        %v955 = vpop.f32.mrb[0].mxu0
        %v956 = vadd.f32 0.0, %v955
        %v957 = vpop.f32.mrb[0].mxu0
        %v958 = vpop.f32.mrb[0].mxu0
        %959 = vdwg.mxu0
        %v960 = vlaneseq
        %v961 = vand.u32 %v960, 127
        %v962 = vadd.s32 %v961, 128
        %v963 = vshra.s32 %v961, 4
        %v964 = vshra.s32 %v962, 4
        %v965 = vcvt.s32.f32 %v963
        %v966 = vcvt.s32.f32 %v964
        %v967 = vand.u32 %v961, 15
        %v968 = vand.u32 %v962, 15
        %v969 = vcvt.s32.f32 %v967
        %v970 = vcvt.s32.f32 %v968
        %v971 = vmul.f32 %v969, 0.13333334
        %v972 = vmul.f32 %v970, 0.13333334
        %v973 = vsub.f32 %v971, 1.0
        %v974 = vsub.f32 %v972, 1.0
        %v975 = vmul.f32 %v965, 0.13333334
        %v976 = vmul.f32 %v966, 0.13333334
        %v977 = vsub.f32 %v975, 1.0
        %v978 = vsub.f32 %v976, 1.0
        %980 = vset.pattern.permute.xlu0 0
        %981 = vperm.xlu0 %980, %v710
        %v982 = vpop.permute.xlu0 %981
        %v984 = vsub.f32 %v973, %v982
        %v985 = vsub.f32 %v974, %v982
        %v986 = vmul.f32 %v984, %v984
        %v987 = vmul.f32 %v985, %v985
        %988 = vset.pattern.permute.xlu0 1
        %989 = vperm.xlu0 %988, %v710
        %v990 = vpop.permute.xlu0 %989
        %v992 = vsub.f32 %v977, %v990
        %v993 = vsub.f32 %v978, %v990
        %v994 = vmul.f32 %v992, %v992
        %v995 = vmul.f32 %v993, %v993
        %v996 = vadd.f32 %v986, %v994
        %v997 = vadd.f32 %v987, %v995
        %v998 = vsub.f32 0.0, %v996
        %v999 = vsub.f32 0.0, %v997
        %v1000 = vmul.f32 %v710, 2.0
        %v1001 = vmul.f32 %v1000, %v710
        %v1002 = vadd.f32 %v1001, 0.0001
        %1004 = vset.pattern.permute.xlu0 2
        %1005 = vperm.xlu0 %1004, %v1002
        %v1006 = vpop.permute.xlu0 %1005
        %v1008 = vrcp.pop %v1006
        %v1009 = vmul.f32 %v998, %v1008
        %v1010 = vmul.f32 %v999, %v1008
        %v1011 = vmul.f32 %v831, 0.1
        %v1012 = vmul.f32 %v833, 0.1
        %v1013 = vadd.f32 %v1009, %v1011
        %v1014 = vadd.f32 %v1010, %v1012
        %1016 = vset.pattern.permute.xlu0 3
        %1017 = vperm.xlu0 %1016, %v706
        %v1018 = vpop.permute.xlu0 %1017
        %v1020 = vadd.f32 %v1013, %v1018
        %v1021 = vadd.f32 %v1014, %v1018
        %vm1022 = vcmask 1043456
        %v1023 = vsel %vm1022, %v1020, -inf
        %v1024 = vrot.slane %v1023, 4
        %v1025 = vmax.f32 %v1023, %v1024
        %v1026 = vrot.slane %v1025, 2
        %v1027 = vmax.f32 %v1025, %v1026
        %v1028 = vrot.slane %v1027, 1
        %v1029 = vmax.f32 %v1027, %v1028
        %v1030 = vsel %vm1022, %v1021, -inf
        %v1031 = vrot.slane %v1030, 4
        %v1032 = vmax.f32 %v1030, %v1031
        %v1033 = vrot.slane %v1032, 2
        %v1034 = vmax.f32 %v1032, %v1033
        %v1035 = vrot.slane %v1034, 1
        %v1036 = vmax.f32 %v1034, %v1035
        %v1038 = vlaneseq
        %v1039 = vshrl.u32 %v1038, 7
        %v1040 = vsub.s32 0, %v1039
        %v1041 = vrot.slane %v639, %v1040
        %v1042 = vlaneseq
        %v1043 = vshrl.u32 %v1042, 7
        %v1044 = vsub.s32 1, %v1043
        %v1045 = vrot.slane %v639, %v1044
        %v1048 = vmax.f32 %v1029, %v1041
        %v1049 = vmax.f32 %v1036, %v1045
        %v1050 = vlaneseq
        %v1051 = vshrl.u32 %v1050, 7
        %v1052 = vsub.s32 0, %v1051
        %v1053 = vrot.slane %v1048, %v1052
        %v1054 = vlaneseq
        %v1055 = vshrl.u32 %v1054, 7
        %v1056 = vsub.s32 0, %v1055
        %v1057 = vrot.slane %v1049, %v1056
        %v1058 = vsub.f32 %v1020, %v1053
        %v1059 = vsub.f32 %v1021, %v1057
        %v1060 = vmul.f32 %v1058, 1.442695
        %v1061 = vpow.pop %v1060
        %v1062 = vmul.f32 %v1059, 1.442695
        %v1063 = vpow.pop %v1062
        %v1066 = vcombine.low %v1048, %v1049
        %v1068 = vunpack.c.l.s4 1966171168
        %v1069 = vunpack.c.0.s8 %v1068
        %v1070 = vlaneseq
        %v1071 = vshrl.u32 %v1070, 7
        %v1072 = vsub.s32 %v1069, %v1071
        %v1073 = vrot.slane %v1066, %v1072
        %v1075 = vunpack.c.l.s4 1966171168
        %v1076 = vunpack.c.0.s8 %v1075
        %v1077 = vlaneseq
        %v1078 = vshrl.u32 %v1077, 7
        %v1079 = vsub.s32 %v1076, %v1078
        %v1080 = vrot.slane %v1073, %v1079
        %v1082 = vsub.f32 %v639, %v1080
        %v1083 = vmul.f32 %v1082, 1.442695
        %v1084 = vpow.pop %v1083
        %v1085 = vsel %vm1022, %v1061, 0.0
        %v1086 = vrot.slane %v1085, 4
        %v1087 = vadd.f32 %v1085, %v1086
        %v1088 = vrot.slane %v1087, 2
        %v1089 = vadd.f32 %v1087, %v1088
        %v1090 = vrot.slane %v1089, 1
        %v1091 = vadd.f32 %v1089, %v1090
        %v1092 = vsel %vm1022, %v1063, 0.0
        %v1093 = vrot.slane %v1092, 4
        %v1094 = vadd.f32 %v1092, %v1093
        %v1095 = vrot.slane %v1094, 2
        %v1096 = vadd.f32 %v1094, %v1095
        %v1097 = vrot.slane %v1096, 1
        %v1098 = vadd.f32 %v1096, %v1097
        %v1100 = vlaneseq
        %v1101 = vshrl.u32 %v1100, 7
        %v1102 = vsub.s32 0, %v1101
        %v1103 = vrot.slane %v1084, %v1102
        %v1104 = vlaneseq
        %v1105 = vshrl.u32 %v1104, 7
        %v1106 = vsub.s32 1, %v1105
        %v1107 = vrot.slane %v1084, %v1106
        %v1110 = vadd.f32 %v1091, %v1103
        %v1111 = vadd.f32 %v1098, %v1107
        %v1112 = vrcp.pop %v1110
        %v1113 = vmul.f32 1.0, %v1112
        %v1114 = vrcp.pop %v1111
        %v1115 = vmul.f32 1.0, %v1114
        %v1116 = vlaneseq
        %v1117 = vshrl.u32 %v1116, 7
        %v1118 = vsub.s32 0, %v1117
        %v1119 = vrot.slane %v1113, %v1118
        %v1120 = vlaneseq
        %v1121 = vshrl.u32 %v1120, 7
        %v1122 = vsub.s32 0, %v1121
        %v1123 = vrot.slane %v1115, %v1122
        %v1124 = vmul.f32 %v1061, %v1119
        %v1125 = vmul.f32 %v1063, %v1123
        %v1126 = vsel %vm1022, %v1124, 0.0
        %v1127 = vsel %vm1022, %v1125, 0.0
        %v1128 = vadd.f32 %v1126, %v1127
        %1129 = vadd.xlane.f32.xlu0 %v1128
        %v1130 = vpop.xlane.xlu0 %1129
        %v1131 = vadd.f32 %v1130, 1e-06
        %v1133 = vcombine.high %v637, %v637
        %1135 = vmatprep.subr.mxu0 %v1133
        %1136 = vmatpush1.xpose.msra.mxu0 %v637
        %1137 = vmatprep.subr.mxu0 0.0
        %1138 = vmatpush1.xpose.msra.mxu0 0.0
        %1139 = vmatprep.subr.mxu0 0.0
        %1140 = vmatpush1.xpose.msra.mxu0 0.0
        %1141 = vmatprep.subr.mxu0 0.0
        %1142 = vmatpush1.xpose.msra.mxu0 0.0
        %1143 = vmatprep.subr.mxu0 0.0
        %1144 = vmatpush1.xpose.msra.mxu0 0.0
        %1145 = vmatprep.subr.mxu0 0.0
        %1146 = vmatpush1.xpose.msra.mxu0 0.0
        %1147 = vmatprep.subr.mxu0 0.0
        %1148 = vmatpush1.xpose.msra.mxu0 0.0
        %1149 = vmatprep.subr.mxu0 0.0
        %1150 = vmatpush1.xpose.msra.mxu0 0.0
        %1151 = vmatprep.subr.mxu0 0.0
        %1152 = vmatpush1.xpose.msra.mxu0 0.0
        %1153 = vmatprep.subr.mxu0 0.0
        %1154 = vmatpush1.xpose.msra.mxu0 0.0
        %1155 = vmatprep.subr.mxu0 0.0
        %1156 = vmatpush1.xpose.msra.mxu0 0.0
        %1157 = vmatprep.subr.mxu0 0.0
        %1158 = vmatpush1.xpose.msra.mxu0 0.0
        %1159 = vmatprep.subr.mxu0 0.0
        %1160 = vmatpush1.xpose.msra.mxu0 0.0
        %1161 = vmatprep.subr.mxu0 0.0
        %1162 = vmatpush1.xpose.msra.mxu0 0.0
        %1163 = vmatprep.subr.mxu0 0.0
        %1164 = vmatpush1.xpose.msra.mxu0 0.0
        %1165 = vmatprep.subr.mxu0 0.0
        %1166 = vmatpush1.xpose.msra.mxu0 0.0
        %1167 = vmatprep.subr.mxu0 0.0
        %1168 = vmatpush1.xpose.msra.mxu0 0.0
        %1169 = vmatprep.subr.mxu0 0.0
        %1170 = vmatpush1.xpose.msra.mxu0 0.0
        %1171 = vmatprep.subr.mxu0 0.0
        %1172 = vmatpush1.xpose.msra.mxu0 0.0
        %1173 = vmatprep.subr.mxu0 0.0
        %1174 = vmatpush1.xpose.msra.mxu0 0.0
        %1175 = vmatprep.subr.mxu0 0.0
        %1176 = vmatpush1.xpose.msra.mxu0 0.0
        %1177 = vmatprep.subr.mxu0 0.0
        %1178 = vmatpush1.xpose.msra.mxu0 0.0
        %1179 = vmatprep.subr.mxu0 0.0
        %1180 = vmatpush1.xpose.msra.mxu0 0.0
        %1181 = vmatprep.subr.mxu0 0.0
        %1182 = vmatpush1.xpose.msra.mxu0 0.0
        %1183 = vmatprep.subr.mxu0 0.0
        %1184 = vmatpush1.xpose.msra.mxu0 0.0
        %1185 = vmatprep.subr.mxu0 0.0
        %1186 = vmatpush1.xpose.msra.mxu0 0.0
        %1187 = vmatprep.subr.mxu0 0.0
        %1188 = vmatpush1.xpose.msra.mxu0 0.0
        %1189 = vmatprep.subr.mxu0 0.0
        %1190 = vmatpush1.xpose.msra.mxu0 0.0
        %1191 = vmatprep.subr.mxu0 0.0
        %1192 = vmatpush1.xpose.msra.mxu0 0.0
        %1193 = vmatprep.subr.mxu0 0.0
        %1194 = vmatpush1.xpose.msra.mxu0 0.0
        %1195 = vmatprep.subr.mxu0 0.0
        %1196 = vmatpush1.xpose.msra.mxu0 0.0
        %1197 = vmatprep.subr.mxu0 0.0
        %1198 = vmatpush1.xpose.msra.mxu0 0.0
        %1199 = vmatprep.mubr.f32.mxu0 %v1125
        %1200 = vmatmul.mubr.f32.gmra.mrb[0].mxu0 %v1124
        %v1201 = vpop.f32.mrb[0].mxu0
        %v1202 = vadd.f32 0.0, %v1201
        %v1203 = vpop.f32.mrb[0].mxu0
        %1204 = vdwg.mxu0
        %v1205 = vrcp.pop %v1131
        %v1206 = vmul.f32 %v1202, %v1205
        %v1207 = vsel %vm1022, %v872, 0.0
        %v1208 = vsel %vm1022, %v874, 0.0
        %v1209 = vadd.f32 %v1207, %v1208
        %1210 = vadd.xlane.f32.xlu0 %v1209
        %v1211 = vpop.xlane.xlu0 %1210
        %v1212 = vmul.f32 %v1211, %v696
        %v1213 = vsel %vm1022, %v913, 0.0
        %v1214 = vsel %vm1022, %v915, 0.0
        %v1215 = vadd.f32 %v1213, %v1214
        %1216 = vadd.xlane.f32.xlu0 %v1215
        %v1217 = vpop.xlane.xlu0 %1216
        %v1218 = vmul.f32 %v1217, %v696
        %v1219 = vsel %vm1022, %v954, 0.0
        %v1220 = vsel %vm1022, %v956, 0.0
        %v1221 = vadd.f32 %v1219, %v1220
        %1222 = vadd.xlane.f32.xlu0 %v1221
        %v1223 = vpop.xlane.xlu0 %1222
        %v1224 = vmul.f32 %v1223, %v696
        %vm1225 = vcmask 7168
        %v1226 = vsel %vm1225, %v1212, %v1218
        %vm1227 = vcmask 15360
        %v1228 = vsel %vm1227, %v1226, %v1224
        %v1229 = vmul.f32 %v1124, %v685
        %v1230 = vmul.f32 %v1125, %v692
        %v1231 = vsel %vm1022, %v1229, 0.0
        %v1232 = vsel %vm1022, %v1230, 0.0
        %v1233 = vadd.f32 %v1231, %v1232
        %1234 = vadd.xlane.f32.xlu0 %v1233
        %v1235 = vpop.xlane.xlu0 %1234
        %v1236 = vmul.f32 %v1235, %v1205
        %1238 = vrot.lane.b32.xlu0 %v1228, 3
        %v1239 = vpop.permute.xlu0 %1238
        %1241 = vrot.lane.b32.xlu0 %v710, 7
        %v1242 = vpop.permute.xlu0 %1241
        %1244 = vrot.lane.b32.xlu0 %v706, 7
        %v1245 = vpop.permute.xlu0 %1244
        %vm1247 = vcmask 23552
        %v1248 = vsel %vm1247, %v1206, %v1239
        %vm1249 = vcmask 48128
        %v1250 = vsel %vm1249, %v1248, %v1236
        %vm1251 = vcmask 56320
        %v1252 = vsel %vm1251, %v1250, %v1242
        %vm1253 = vcmask 80896
        %v1254 = vsel %vm1253, %v1252, %v1245
        %v1255 = vld [vmem:[%s6] sm:$0xff]
        %v1256 = vld [vmem:[%s6 + $0x8] sm:$0x7]
        %vm1257 = vcmask 89088
        %v1259 = vsel %vm1257, %v1254, 0
        %v1262 = vsel %vm661, %v1256, 0
        %1264 = vmatprep.subr.mxu0 0.0
        %1265 = vmatpush1.msra.mxu0 %v1255
        %1266 = vmatprep.subr.mxu0 0.0
        %1267 = vmatpush1.msra.mxu0 %v1262
        %1268 = vmatprep.subr.mxu0 0.0
        %1269 = vmatpush1.msra.mxu0 0.0
        %1270 = vmatprep.subr.mxu0 0.0
        %1271 = vmatpush1.msra.mxu0 0.0
        %1272 = vmatprep.subr.mxu0 0.0
        %1273 = vmatpush1.msra.mxu0 0.0
        %1274 = vmatprep.subr.mxu0 0.0
        %1275 = vmatpush1.msra.mxu0 0.0
        %1276 = vmatprep.subr.mxu0 0.0
        %1277 = vmatpush1.msra.mxu0 0.0
        %1278 = vmatprep.subr.mxu0 0.0
        %1279 = vmatpush1.msra.mxu0 0.0
        %1280 = vmatprep.subr.mxu0 0.0
        %1281 = vmatpush1.msra.mxu0 0.0
        %1282 = vmatprep.subr.mxu0 0.0
        %1283 = vmatpush1.msra.mxu0 0.0
        %1284 = vmatprep.subr.mxu0 0.0
        %1285 = vmatpush1.msra.mxu0 0.0
        %1286 = vmatprep.subr.mxu0 0.0
        %1287 = vmatpush1.msra.mxu0 0.0
        %1288 = vmatprep.subr.mxu0 0.0
        %1289 = vmatpush1.msra.mxu0 0.0
        %1290 = vmatprep.subr.mxu0 0.0
        %1291 = vmatpush1.msra.mxu0 0.0
        %1292 = vmatprep.subr.mxu0 0.0
        %1293 = vmatpush1.msra.mxu0 0.0
        %1294 = vmatprep.subr.mxu0 0.0
        %1295 = vmatpush1.msra.mxu0 0.0
        %1296 = vmatprep.subr.mxu0 0.0
        %1297 = vmatpush1.msra.mxu0 0.0
        %1298 = vmatprep.subr.mxu0 0.0
        %1299 = vmatpush1.msra.mxu0 0.0
        %1300 = vmatprep.subr.mxu0 0.0
        %1301 = vmatpush1.msra.mxu0 0.0
        %1302 = vmatprep.subr.mxu0 0.0
        %1303 = vmatpush1.msra.mxu0 0.0
        %1304 = vmatprep.subr.mxu0 0.0
        %1305 = vmatpush1.msra.mxu0 0.0
        %1306 = vmatprep.subr.mxu0 0.0
        %1307 = vmatpush1.msra.mxu0 0.0
        %1308 = vmatprep.subr.mxu0 0.0
        %1309 = vmatpush1.msra.mxu0 0.0
        %1310 = vmatprep.subr.mxu0 0.0
        %1311 = vmatpush1.msra.mxu0 0.0
        %1312 = vmatprep.subr.mxu0 0.0
        %1313 = vmatpush1.msra.mxu0 0.0
        %1314 = vmatprep.subr.mxu0 0.0
        %1315 = vmatpush1.msra.mxu0 0.0
        %1316 = vmatprep.subr.mxu0 0.0
        %1317 = vmatpush1.msra.mxu0 0.0
        %1318 = vmatprep.subr.mxu0 0.0
        %1319 = vmatpush1.msra.mxu0 0.0
        %1320 = vmatprep.subr.mxu0 0.0
        %1321 = vmatpush1.msra.mxu0 0.0
        %1322 = vmatprep.subr.mxu0 0.0
        %1323 = vmatpush1.msra.mxu0 0.0
        %1324 = vmatprep.subr.mxu0 0.0
        %1325 = vmatpush1.msra.mxu0 0.0
        %1326 = vmatprep.subr.mxu0 0.0
        %1327 = vmatpush1.msra.mxu0 0.0
        %1328 = vmatprep.mubr.f32.mxu0 0.0
        %1329 = vmatmul.mubr.f32.gmra.mrb[0].mxu0 %v1259
        %v1330 = vpop.f32.mrb[0].mxu0
        %v1331 = vadd.f32 0.0, %v1330
        %v1332 = vpop.f32.mrb[0].mxu0
        %1333 = vdwg.mxu0
        %v1334 = vtanh.pop %v1331
        %v1335 = vld [vmem:[%s7] sm:$0xff]
        %v1336 = vld [vmem:[%s7 + $0x8] sm:$0xff]
        %v1337 = vld [vmem:[%s7 + $0x10] sm:$0xff]
        %v1338 = vld [vmem:[%s7 + $0x18] sm:$0xff]
        %v1340 = vsel %vm792, %v1334, 0
        %1342 = vmatprep.subr.mxu0 0.0
        %1343 = vmatpush1.msra.mxu0 %v1335
        %1344 = vmatprep.subr.mxu0 0.0
        %1345 = vmatpush1.msra.mxu0 %v1336
        %1346 = vmatprep.subr.mxu0 0.0
        %1347 = vmatpush1.msra.mxu0 %v1337
        %1348 = vmatprep.subr.mxu0 0.0
        %1349 = vmatpush1.msra.mxu0 %v1338
        %1350 = vmatprep.subr.mxu0 0.0
        %1351 = vmatpush1.msra.mxu0 0.0
        %1352 = vmatprep.subr.mxu0 0.0
        %1353 = vmatpush1.msra.mxu0 0.0
        %1354 = vmatprep.subr.mxu0 0.0
        %1355 = vmatpush1.msra.mxu0 0.0
        %1356 = vmatprep.subr.mxu0 0.0
        %1357 = vmatpush1.msra.mxu0 0.0
        %1358 = vmatprep.subr.mxu0 0.0
        %1359 = vmatpush1.msra.mxu0 0.0
        %1360 = vmatprep.subr.mxu0 0.0
        %1361 = vmatpush1.msra.mxu0 0.0
        %1362 = vmatprep.subr.mxu0 0.0
        %1363 = vmatpush1.msra.mxu0 0.0
        %1364 = vmatprep.subr.mxu0 0.0
        %1365 = vmatpush1.msra.mxu0 0.0
        %1366 = vmatprep.subr.mxu0 0.0
        %1367 = vmatpush1.msra.mxu0 0.0
        %1368 = vmatprep.subr.mxu0 0.0
        %1369 = vmatpush1.msra.mxu0 0.0
        %1370 = vmatprep.subr.mxu0 0.0
        %1371 = vmatpush1.msra.mxu0 0.0
        %1372 = vmatprep.subr.mxu0 0.0
        %1373 = vmatpush1.msra.mxu0 0.0
        %1374 = vmatprep.subr.mxu0 0.0
        %1375 = vmatpush1.msra.mxu0 0.0
        %1376 = vmatprep.subr.mxu0 0.0
        %1377 = vmatpush1.msra.mxu0 0.0
        %1378 = vmatprep.subr.mxu0 0.0
        %1379 = vmatpush1.msra.mxu0 0.0
        %1380 = vmatprep.subr.mxu0 0.0
        %1381 = vmatpush1.msra.mxu0 0.0
        %1382 = vmatprep.subr.mxu0 0.0
        %1383 = vmatpush1.msra.mxu0 0.0
        %1384 = vmatprep.subr.mxu0 0.0
        %1385 = vmatpush1.msra.mxu0 0.0
        %1386 = vmatprep.subr.mxu0 0.0
        %1387 = vmatpush1.msra.mxu0 0.0
        %1388 = vmatprep.subr.mxu0 0.0
        %1389 = vmatpush1.msra.mxu0 0.0
        %1390 = vmatprep.subr.mxu0 0.0
        %1391 = vmatpush1.msra.mxu0 0.0
        %1392 = vmatprep.subr.mxu0 0.0
        %1393 = vmatpush1.msra.mxu0 0.0
        %1394 = vmatprep.subr.mxu0 0.0
        %1395 = vmatpush1.msra.mxu0 0.0
        %1396 = vmatprep.subr.mxu0 0.0
        %1397 = vmatpush1.msra.mxu0 0.0
        %1398 = vmatprep.subr.mxu0 0.0
        %1399 = vmatpush1.msra.mxu0 0.0
        %1400 = vmatprep.subr.mxu0 0.0
        %1401 = vmatpush1.msra.mxu0 0.0
        %1402 = vmatprep.subr.mxu0 0.0
        %1403 = vmatpush1.msra.mxu0 0.0
        %1404 = vmatprep.subr.mxu0 0.0
        %1405 = vmatpush1.msra.mxu0 0.0
        %1406 = vmatprep.mubr.f32.mxu0 0.0
        %1407 = vmatmul.mubr.f32.gmra.mrb[0].mxu0 %v1340
        %v1408 = vpop.f32.mrb[0].mxu0
        %v1409 = vadd.f32 0.0, %v1408
        %v1410 = vpop.f32.mrb[0].mxu0
        %1411 = vdwg.mxu0
        %v1412 = vtanh.pop %v1409
        %v1413 = vmul.f32 %v1412, 0.1
        %v1414 = vadd.f32 %v710, %v1413
        %v1415 = vxor.u32 %v1409, 2147483648
        %v1416 = vmul.f32 %v1415, 1.442695
        %v1417 = vpow.pop %v1416
        %v1418 = vadd.f32 %v1417, 1.0
        %v1419 = vrcp.pop %v1418
        %v1420 = vmul.f32 1.0, %v1419
        %v1421 = vmul.f32 %v1409, 0.1
        %1423 = vrot.lane.b32.xlu0 %v1421, 96
        %v1424 = vpop.permute.xlu0 %1423
        %v1426 = vadd.f32 %v706, %v1424
        %1428 = vrot.lane.b32.xlu0 %v1426, 32
        %v1429 = vpop.permute.xlu0 %1428
        %v1431 = vsel %vm1247, %v1414, %v1420
        %vm1432 = vcmask 285696
        %v1433 = vsel %vm1432, %v1431, %v1429
        %v1434 = vld [vmem:[%s8] sm:$0xff]
        %v1435 = vld [vmem:[%s8 + $0x8] sm:$0xff]
        %v1436 = vld [vmem:[%s8 + $0x10] sm:$0xff]
        %v1437 = vld [vmem:[%s8 + $0x18] sm:$0xff]
        %v1438 = vld [vmem:[%s8 + $0x20] sm:$0xf]
        %vm1439 = vcmask 293888
        %v1441 = vsel %vm1439, %v1433, 0
        %v1444 = vsel %vm1022, %v1438, 0
        %1446 = vmatprep.subr.mxu0 0.0
        %1447 = vmatpush1.msra.mxu0 %v1434
        %1448 = vmatprep.subr.mxu0 0.0
        %1449 = vmatpush1.msra.mxu0 %v1435
        %1450 = vmatprep.subr.mxu0 0.0
        %1451 = vmatpush1.msra.mxu0 %v1436
        %1452 = vmatprep.subr.mxu0 0.0
        %1453 = vmatpush1.msra.mxu0 %v1437
        %1454 = vmatprep.subr.mxu0 0.0
        %1455 = vmatpush1.msra.mxu0 %v1444
        %1456 = vmatprep.subr.mxu0 0.0
        %1457 = vmatpush1.msra.mxu0 0.0
        %1458 = vmatprep.subr.mxu0 0.0
        %1459 = vmatpush1.msra.mxu0 0.0
        %1460 = vmatprep.subr.mxu0 0.0
        %1461 = vmatpush1.msra.mxu0 0.0
        %1462 = vmatprep.subr.mxu0 0.0
        %1463 = vmatpush1.msra.mxu0 0.0
        %1464 = vmatprep.subr.mxu0 0.0
        %1465 = vmatpush1.msra.mxu0 0.0
        %1466 = vmatprep.subr.mxu0 0.0
        %1467 = vmatpush1.msra.mxu0 0.0
        %1468 = vmatprep.subr.mxu0 0.0
        %1469 = vmatpush1.msra.mxu0 0.0
        %1470 = vmatprep.subr.mxu0 0.0
        %1471 = vmatpush1.msra.mxu0 0.0
        %1472 = vmatprep.subr.mxu0 0.0
        %1473 = vmatpush1.msra.mxu0 0.0
        %1474 = vmatprep.subr.mxu0 0.0
        %1475 = vmatpush1.msra.mxu0 0.0
        %1476 = vmatprep.subr.mxu0 0.0
        %1477 = vmatpush1.msra.mxu0 0.0
        %1478 = vmatprep.subr.mxu0 0.0
        %1479 = vmatpush1.msra.mxu0 0.0
        %1480 = vmatprep.subr.mxu0 0.0
        %1481 = vmatpush1.msra.mxu0 0.0
        %1482 = vmatprep.subr.mxu0 0.0
        %1483 = vmatpush1.msra.mxu0 0.0
        %1484 = vmatprep.subr.mxu0 0.0
        %1485 = vmatpush1.msra.mxu0 0.0
        %1486 = vmatprep.subr.mxu0 0.0
        %1487 = vmatpush1.msra.mxu0 0.0
        %1488 = vmatprep.subr.mxu0 0.0
        %1489 = vmatpush1.msra.mxu0 0.0
        %1490 = vmatprep.subr.mxu0 0.0
        %1491 = vmatpush1.msra.mxu0 0.0
        %1492 = vmatprep.subr.mxu0 0.0
        %1493 = vmatpush1.msra.mxu0 0.0
        %1494 = vmatprep.subr.mxu0 0.0
        %1495 = vmatpush1.msra.mxu0 0.0
        %1496 = vmatprep.subr.mxu0 0.0
        %1497 = vmatpush1.msra.mxu0 0.0
        %1498 = vmatprep.subr.mxu0 0.0
        %1499 = vmatpush1.msra.mxu0 0.0
        %1500 = vmatprep.subr.mxu0 0.0
        %1501 = vmatpush1.msra.mxu0 0.0
        %1502 = vmatprep.subr.mxu0 0.0
        %1503 = vmatpush1.msra.mxu0 0.0
        %1504 = vmatprep.subr.mxu0 0.0
        %1505 = vmatpush1.msra.mxu0 0.0
        %1506 = vmatprep.subr.mxu0 0.0
        %1507 = vmatpush1.msra.mxu0 0.0
        %1508 = vmatprep.subr.mxu0 0.0
        %1509 = vmatpush1.msra.mxu0 0.0
        %1510 = vmatprep.mubr.f32.mxu0 0.0
        %1511 = vmatmul.mubr.f32.gmra.mrb[0].mxu0 %v1441
        %v1512 = vpop.f32.mrb[0].mxu0
        %v1513 = vadd.f32 0.0, %v1512
        %v1514 = vpop.f32.mrb[0].mxu0
        %1515 = vdwg.mxu0
        %v1516 = vtanh.pop %v1513
        %v1517 = vld [vmem:[%s9] sm:$0xff]
        %v1518 = vld [vmem:[%s9 + $0x8] sm:$0xff]
        %v1519 = vld [vmem:[%s9 + $0x10] sm:$0xff]
        %v1520 = vld [vmem:[%s9 + $0x18] sm:$0xff]
        %v1522 = vsel %vm792, %v1516, 0
        %1524 = vmatprep.subr.mxu0 0.0
        %1525 = vmatpush1.msra.mxu0 %v1517
        %1526 = vmatprep.subr.mxu0 0.0
        %1527 = vmatpush1.msra.mxu0 %v1518
        %1528 = vmatprep.subr.mxu0 0.0
        %1529 = vmatpush1.msra.mxu0 %v1519
        %1530 = vmatprep.subr.mxu0 0.0
        %1531 = vmatpush1.msra.mxu0 %v1520
        %1532 = vmatprep.subr.mxu0 0.0
        %1533 = vmatpush1.msra.mxu0 0.0
        %1534 = vmatprep.subr.mxu0 0.0
        %1535 = vmatpush1.msra.mxu0 0.0
        %1536 = vmatprep.subr.mxu0 0.0
        %1537 = vmatpush1.msra.mxu0 0.0
        %1538 = vmatprep.subr.mxu0 0.0
        %1539 = vmatpush1.msra.mxu0 0.0
        %1540 = vmatprep.subr.mxu0 0.0
        %1541 = vmatpush1.msra.mxu0 0.0
        %1542 = vmatprep.subr.mxu0 0.0
        %1543 = vmatpush1.msra.mxu0 0.0
        %1544 = vmatprep.subr.mxu0 0.0
        %1545 = vmatpush1.msra.mxu0 0.0
        %1546 = vmatprep.subr.mxu0 0.0
        %1547 = vmatpush1.msra.mxu0 0.0
        %1548 = vmatprep.subr.mxu0 0.0
        %1549 = vmatpush1.msra.mxu0 0.0
        %1550 = vmatprep.subr.mxu0 0.0
        %1551 = vmatpush1.msra.mxu0 0.0
        %1552 = vmatprep.subr.mxu0 0.0
        %1553 = vmatpush1.msra.mxu0 0.0
        %1554 = vmatprep.subr.mxu0 0.0
        %1555 = vmatpush1.msra.mxu0 0.0
        %1556 = vmatprep.subr.mxu0 0.0
        %1557 = vmatpush1.msra.mxu0 0.0
        %1558 = vmatprep.subr.mxu0 0.0
        %1559 = vmatpush1.msra.mxu0 0.0
        %1560 = vmatprep.subr.mxu0 0.0
        %1561 = vmatpush1.msra.mxu0 0.0
        %1562 = vmatprep.subr.mxu0 0.0
        %1563 = vmatpush1.msra.mxu0 0.0
        %1564 = vmatprep.subr.mxu0 0.0
        %1565 = vmatpush1.msra.mxu0 0.0
        %1566 = vmatprep.subr.mxu0 0.0
        %1567 = vmatpush1.msra.mxu0 0.0
        %1568 = vmatprep.subr.mxu0 0.0
        %1569 = vmatpush1.msra.mxu0 0.0
        %1570 = vmatprep.subr.mxu0 0.0
        %1571 = vmatpush1.msra.mxu0 0.0
        %1572 = vmatprep.subr.mxu0 0.0
        %1573 = vmatpush1.msra.mxu0 0.0
        %1574 = vmatprep.subr.mxu0 0.0
        %1575 = vmatpush1.msra.mxu0 0.0
        %1576 = vmatprep.subr.mxu0 0.0
        %1577 = vmatpush1.msra.mxu0 0.0
        %1578 = vmatprep.subr.mxu0 0.0
        %1579 = vmatpush1.msra.mxu0 0.0
        %1580 = vmatprep.subr.mxu0 0.0
        %1581 = vmatpush1.msra.mxu0 0.0
        %1582 = vmatprep.subr.mxu0 0.0
        %1583 = vmatpush1.msra.mxu0 0.0
        %1584 = vmatprep.subr.mxu0 0.0
        %1585 = vmatpush1.msra.mxu0 0.0
        %1586 = vmatprep.subr.mxu0 0.0
        %1587 = vmatpush1.msra.mxu0 0.0
        %1588 = vmatprep.mubr.f32.mxu0 0.0
        %1589 = vmatmul.mubr.f32.gmra.mrb[0].mxu0 %v1522
        %v1590 = vpop.f32.mrb[0].mxu0
        %v1591 = vadd.f32 0.0, %v1590
        %v1592 = vpop.f32.mrb[0].mxu0
        %1593 = vdwg.mxu0
        %v1594 = vtanh.pop %v1591
        %v1595 = vmul.f32 %v1594, 0.1
        %v1596 = vadd.f32 %v1414, %v1595
        %v1597 = vadd.f32 %v1420, %v1591
        %v1598 = vxor.u32 %v1597, 2147483648
        %v1599 = vmul.f32 %v1598, 1.442695
        %v1600 = vpow.pop %v1599
        %v1601 = vadd.f32 %v1600, 1.0
        %v1602 = vrcp.pop %v1601
        %v1603 = vmul.f32 1.0, %v1602
        %v1604 = vmul.f32 %v1591, 0.1
        %1606 = vrot.lane.b32.xlu0 %v1604, 96
        %v1607 = vpop.permute.xlu0 %1606
        %v1609 = vadd.f32 %v1426, %v1607
        %vm1610 = vcmask 19456
        %v1611 = vsel %vm1610, %v1596, 0.0
        %v1612 = vrot.slane %v1611, 4
        %v1613 = vadd.f32 %v1611, %v1612
        %v1614 = vrot.slane %v1613, 2
        %v1615 = vadd.f32 %v1613, %v1614
        %v1616 = vrot.slane %v1615, 1
        %v1617 = vadd.f32 %v1615, %v1616
        %v1618 = vrcp.pop 4.0
        %v1619 = vmul.f32 %v1617, %v1618
        %v1620 = vpack.c.bf16 %v1603, %v1603
        %1622 = vrot.lane.b32.xlu0 %v1620, 125
        %v1623 = vpop.permute.xlu0 %1622
        %v1625 = vsel %vm792, %v1623, 0
        %1627 = vmatprep.subr.bf16.mxu0 %v761
        %1628 = vmatpush1.bf16.msra.mxu0 %v760
        %1629 = vmatprep.subr.bf16.mxu0 %v769
        %1630 = vmatpush1.bf16.msra.mxu0 %v768
        %1631 = vmatprep.subr.bf16.mxu0 0
        %1632 = vmatpush1.bf16.msra.mxu0 0
        %1633 = vmatprep.subr.bf16.mxu0 0
        %1634 = vmatpush1.bf16.msra.mxu0 0
        %1635 = vmatprep.subr.bf16.mxu0 0
        %1636 = vmatpush1.bf16.msra.mxu0 0
        %1637 = vmatprep.subr.bf16.mxu0 0
        %1638 = vmatpush1.bf16.msra.mxu0 0
        %1639 = vmatprep.subr.bf16.mxu0 0
        %1640 = vmatpush1.bf16.msra.mxu0 0
        %1641 = vmatprep.subr.bf16.mxu0 0
        %1642 = vmatpush1.bf16.msra.mxu0 0
        %1643 = vmatprep.subr.bf16.mxu0 0
        %1644 = vmatpush1.bf16.msra.mxu0 0
        %1645 = vmatprep.subr.bf16.mxu0 0
        %1646 = vmatpush1.bf16.msra.mxu0 0
        %1647 = vmatprep.subr.bf16.mxu0 0
        %1648 = vmatpush1.bf16.msra.mxu0 0
        %1649 = vmatprep.subr.bf16.mxu0 0
        %1650 = vmatpush1.bf16.msra.mxu0 0
        %1651 = vmatprep.subr.bf16.mxu0 0
        %1652 = vmatpush1.bf16.msra.mxu0 0
        %1653 = vmatprep.subr.bf16.mxu0 0
        %1654 = vmatpush1.bf16.msra.mxu0 0
        %1655 = vmatprep.subr.bf16.mxu0 0
        %1656 = vmatpush1.bf16.msra.mxu0 0
        %1657 = vmatprep.subr.bf16.mxu0 0
        %1658 = vmatpush1.bf16.msra.mxu0 0
        %1659 = vmatprep.mubr.bf16.mxu0 0
        %1660 = vmatmul.mubr.bf16.gmra.mrb[0].mxu0 %v1625
        %v1661 = vpop.f32.mrb[0].mxu0
        %v1662 = vadd.f32 0.0, %v1661
        %v1663 = vpop.f32.mrb[0].mxu0
        %v1664 = vadd.f32 0.0, %v1663
        %v1665 = vpop.f32.mrb[0].mxu0
        %v1666 = vpop.f32.mrb[0].mxu0
        %1667 = vdwg.mxu0
        %1668 = vmatprep.subr.bf16.mxu0 %v763
        %1669 = vmatpush1.bf16.msra.mxu0 %v762
        %1670 = vmatprep.subr.bf16.mxu0 %v771
        %1671 = vmatpush1.bf16.msra.mxu0 %v770
        %1672 = vmatprep.subr.bf16.mxu0 0
        %1673 = vmatpush1.bf16.msra.mxu0 0
        %1674 = vmatprep.subr.bf16.mxu0 0
        %1675 = vmatpush1.bf16.msra.mxu0 0
        %1676 = vmatprep.subr.bf16.mxu0 0
        %1677 = vmatpush1.bf16.msra.mxu0 0
        %1678 = vmatprep.subr.bf16.mxu0 0
        %1679 = vmatpush1.bf16.msra.mxu0 0
        %1680 = vmatprep.subr.bf16.mxu0 0
        %1681 = vmatpush1.bf16.msra.mxu0 0
        %1682 = vmatprep.subr.bf16.mxu0 0
        %1683 = vmatpush1.bf16.msra.mxu0 0
        %1684 = vmatprep.subr.bf16.mxu0 0
        %1685 = vmatpush1.bf16.msra.mxu0 0
        %1686 = vmatprep.subr.bf16.mxu0 0
        %1687 = vmatpush1.bf16.msra.mxu0 0
        %1688 = vmatprep.subr.bf16.mxu0 0
        %1689 = vmatpush1.bf16.msra.mxu0 0
        %1690 = vmatprep.subr.bf16.mxu0 0
        %1691 = vmatpush1.bf16.msra.mxu0 0
        %1692 = vmatprep.subr.bf16.mxu0 0
        %1693 = vmatpush1.bf16.msra.mxu0 0
        %1694 = vmatprep.subr.bf16.mxu0 0
        %1695 = vmatpush1.bf16.msra.mxu0 0
        %1696 = vmatprep.subr.bf16.mxu0 0
        %1697 = vmatpush1.bf16.msra.mxu0 0
        %1698 = vmatprep.subr.bf16.mxu0 0
        %1699 = vmatpush1.bf16.msra.mxu0 0
        %1700 = vmatprep.mubr.bf16.mxu0 0
        %1701 = vmatmul.mubr.bf16.gmra.mrb[0].mxu0 %v1625
        %v1702 = vpop.f32.mrb[0].mxu0
        %v1703 = vadd.f32 0.0, %v1702
        %v1704 = vpop.f32.mrb[0].mxu0
        %v1705 = vadd.f32 0.0, %v1704
        %v1706 = vpop.f32.mrb[0].mxu0
        %v1707 = vpop.f32.mrb[0].mxu0
        %1708 = vdwg.mxu0
        %1709 = vmatprep.subr.bf16.mxu0 %v765
        %1710 = vmatpush1.bf16.msra.mxu0 %v764
        %1711 = vmatprep.subr.bf16.mxu0 %v773
        %1712 = vmatpush1.bf16.msra.mxu0 %v772
        %1713 = vmatprep.subr.bf16.mxu0 0
        %1714 = vmatpush1.bf16.msra.mxu0 0
        %1715 = vmatprep.subr.bf16.mxu0 0
        %1716 = vmatpush1.bf16.msra.mxu0 0
        %1717 = vmatprep.subr.bf16.mxu0 0
        %1718 = vmatpush1.bf16.msra.mxu0 0
        %1719 = vmatprep.subr.bf16.mxu0 0
        %1720 = vmatpush1.bf16.msra.mxu0 0
        %1721 = vmatprep.subr.bf16.mxu0 0
        %1722 = vmatpush1.bf16.msra.mxu0 0
        %1723 = vmatprep.subr.bf16.mxu0 0
        %1724 = vmatpush1.bf16.msra.mxu0 0
        %1725 = vmatprep.subr.bf16.mxu0 0
        %1726 = vmatpush1.bf16.msra.mxu0 0
        %1727 = vmatprep.subr.bf16.mxu0 0
        %1728 = vmatpush1.bf16.msra.mxu0 0
        %1729 = vmatprep.subr.bf16.mxu0 0
        %1730 = vmatpush1.bf16.msra.mxu0 0
        %1731 = vmatprep.subr.bf16.mxu0 0
        %1732 = vmatpush1.bf16.msra.mxu0 0
        %1733 = vmatprep.subr.bf16.mxu0 0
        %1734 = vmatpush1.bf16.msra.mxu0 0
        %1735 = vmatprep.subr.bf16.mxu0 0
        %1736 = vmatpush1.bf16.msra.mxu0 0
        %1737 = vmatprep.subr.bf16.mxu0 0
        %1738 = vmatpush1.bf16.msra.mxu0 0
        %1739 = vmatprep.subr.bf16.mxu0 0
        %1740 = vmatpush1.bf16.msra.mxu0 0
        %1741 = vmatprep.mubr.bf16.mxu0 0
        %1742 = vmatmul.mubr.bf16.gmra.mrb[0].mxu0 %v1625
        %v1743 = vpop.f32.mrb[0].mxu0
        %v1744 = vadd.f32 0.0, %v1743
        %v1745 = vpop.f32.mrb[0].mxu0
        %v1746 = vadd.f32 0.0, %v1745
        %v1747 = vpop.f32.mrb[0].mxu0
        %v1748 = vpop.f32.mrb[0].mxu0
        %1749 = vdwg.mxu0
        %1750 = vmatprep.subr.bf16.mxu0 %v767
        %1751 = vmatpush1.bf16.msra.mxu0 %v766
        %1752 = vmatprep.subr.bf16.mxu0 %v775
        %1753 = vmatpush1.bf16.msra.mxu0 %v774
        %1754 = vmatprep.subr.bf16.mxu0 0
        %1755 = vmatpush1.bf16.msra.mxu0 0
        %1756 = vmatprep.subr.bf16.mxu0 0
        %1757 = vmatpush1.bf16.msra.mxu0 0
        %1758 = vmatprep.subr.bf16.mxu0 0
        %1759 = vmatpush1.bf16.msra.mxu0 0
        %1760 = vmatprep.subr.bf16.mxu0 0
        %1761 = vmatpush1.bf16.msra.mxu0 0
        %1762 = vmatprep.subr.bf16.mxu0 0
        %1763 = vmatpush1.bf16.msra.mxu0 0
        %1764 = vmatprep.subr.bf16.mxu0 0
        %1765 = vmatpush1.bf16.msra.mxu0 0
        %1766 = vmatprep.subr.bf16.mxu0 0
        %1767 = vmatpush1.bf16.msra.mxu0 0
        %1768 = vmatprep.subr.bf16.mxu0 0
        %1769 = vmatpush1.bf16.msra.mxu0 0
        %1770 = vmatprep.subr.bf16.mxu0 0
        %1771 = vmatpush1.bf16.msra.mxu0 0
        %1772 = vmatprep.subr.bf16.mxu0 0
        %1773 = vmatpush1.bf16.msra.mxu0 0
        %1774 = vmatprep.subr.bf16.mxu0 0
        %1775 = vmatpush1.bf16.msra.mxu0 0
        %1776 = vmatprep.subr.bf16.mxu0 0
        %1777 = vmatpush1.bf16.msra.mxu0 0
        %1778 = vmatprep.subr.bf16.mxu0 0
        %1779 = vmatpush1.bf16.msra.mxu0 0
        %1780 = vmatprep.subr.bf16.mxu0 0
        %1781 = vmatpush1.bf16.msra.mxu0 0
        %1782 = vmatprep.mubr.bf16.mxu0 0
        %1783 = vmatmul.mubr.bf16.gmra.mrb[0].mxu0 %v1625
        %v1784 = vpop.f32.mrb[0].mxu0
        %v1785 = vadd.f32 0.0, %v1784
        %v1786 = vpop.f32.mrb[0].mxu0
        %v1787 = vadd.f32 0.0, %v1786
        %v1788 = vpop.f32.mrb[0].mxu0
        %v1789 = vpop.f32.mrb[0].mxu0
        %1790 = vdwg.mxu0
        %v1791 = vsub.f32 %v1703, 2.5
        %v1792 = vsub.f32 %v1705, 2.5
        %v1793 = vsub.f32 %v1744, 2.5
        %v1794 = vsub.f32 %v1746, 2.5
        %v1795 = vsub.f32 %v1785, 2.5
        %v1796 = vsub.f32 %v1787, 2.5
        %v1797 = vxor.u32 %v1791, 2147483648
        %v1798 = vxor.u32 %v1792, 2147483648
        %v1799 = vxor.u32 %v1793, 2147483648
        %v1800 = vxor.u32 %v1794, 2147483648
        %v1801 = vxor.u32 %v1795, 2147483648
        %v1802 = vxor.u32 %v1796, 2147483648
        %v1803 = vmul.f32 %v1797, 1.442695
        %v1804 = vpow.pop %v1803
        %v1805 = vmul.f32 %v1798, 1.442695
        %v1806 = vpow.pop %v1805
        %v1807 = vmul.f32 %v1799, 1.442695
        %v1808 = vpow.pop %v1807
        %v1809 = vmul.f32 %v1800, 1.442695
        %v1810 = vpow.pop %v1809
        %v1811 = vmul.f32 %v1801, 1.442695
        %v1812 = vpow.pop %v1811
        %v1813 = vmul.f32 %v1802, 1.442695
        %v1814 = vpow.pop %v1813
        %v1815 = vadd.f32 %v1804, 1.0
        %v1816 = vadd.f32 %v1806, 1.0
        %v1817 = vadd.f32 %v1808, 1.0
        %v1818 = vadd.f32 %v1810, 1.0
        %v1819 = vadd.f32 %v1812, 1.0
        %v1820 = vadd.f32 %v1814, 1.0
        %v1821 = vrcp.pop %v1815
        %v1822 = vmul.f32 1.0, %v1821
        %v1823 = vrcp.pop %v1816
        %v1824 = vmul.f32 1.0, %v1823
        %v1825 = vrcp.pop %v1817
        %v1826 = vmul.f32 1.0, %v1825
        %v1827 = vrcp.pop %v1818
        %v1828 = vmul.f32 1.0, %v1827
        %v1829 = vrcp.pop %v1819
        %v1830 = vmul.f32 1.0, %v1829
        %v1831 = vrcp.pop %v1820
        %v1832 = vmul.f32 1.0, %v1831
        %1834 = vset.pattern.permute.xlu0 0
        %1835 = vperm.xlu0 %1834, %v1596
        %v1836 = vpop.permute.xlu0 %1835
        %v1838 = vsub.f32 %v973, %v1836
        %v1839 = vsub.f32 %v974, %v1836
        %v1840 = vmul.f32 %v1838, %v1838
        %v1841 = vmul.f32 %v1839, %v1839
        %1842 = vset.pattern.permute.xlu0 1
        %1843 = vperm.xlu0 %1842, %v1596
        %v1844 = vpop.permute.xlu0 %1843
        %v1846 = vsub.f32 %v977, %v1844
        %v1847 = vsub.f32 %v978, %v1844
        %v1848 = vmul.f32 %v1846, %v1846
        %v1849 = vmul.f32 %v1847, %v1847
        %v1850 = vadd.f32 %v1840, %v1848
        %v1851 = vadd.f32 %v1841, %v1849
        %v1852 = vsub.f32 0.0, %v1850
        %v1853 = vsub.f32 0.0, %v1851
        %v1854 = vmul.f32 %v1596, 2.0
        %v1855 = vmul.f32 %v1854, %v1596
        %v1856 = vadd.f32 %v1855, 0.0001
        %1858 = vset.pattern.permute.xlu0 2
        %1859 = vperm.xlu0 %1858, %v1856
        %v1860 = vpop.permute.xlu0 %1859
        %v1862 = vrcp.pop %v1860
        %v1863 = vmul.f32 %v1852, %v1862
        %v1864 = vmul.f32 %v1853, %v1862
        %v1865 = vmul.f32 %v1662, 0.1
        %v1866 = vmul.f32 %v1664, 0.1
        %v1867 = vadd.f32 %v1863, %v1865
        %v1868 = vadd.f32 %v1864, %v1866
        %1870 = vset.pattern.permute.xlu0 3
        %1871 = vperm.xlu0 %1870, %v1609
        %v1872 = vpop.permute.xlu0 %1871
        %v1874 = vadd.f32 %v1867, %v1872
        %v1875 = vadd.f32 %v1868, %v1872
        %v1876 = vsel %vm1022, %v1874, -inf
        %v1877 = vrot.slane %v1876, 4
        %v1878 = vmax.f32 %v1876, %v1877
        %v1879 = vrot.slane %v1878, 2
        %v1880 = vmax.f32 %v1878, %v1879
        %v1881 = vrot.slane %v1880, 1
        %v1882 = vmax.f32 %v1880, %v1881
        %v1883 = vsel %vm1022, %v1875, -inf
        %v1884 = vrot.slane %v1883, 4
        %v1885 = vmax.f32 %v1883, %v1884
        %v1886 = vrot.slane %v1885, 2
        %v1887 = vmax.f32 %v1885, %v1886
        %v1888 = vrot.slane %v1887, 1
        %v1889 = vmax.f32 %v1887, %v1888
        %v1890 = vmax.f32 %v1882, %v1041
        %v1891 = vmax.f32 %v1889, %v1045
        %v1892 = vlaneseq
        %v1893 = vshrl.u32 %v1892, 7
        %v1894 = vsub.s32 0, %v1893
        %v1895 = vrot.slane %v1890, %v1894
        %v1896 = vlaneseq
        %v1897 = vshrl.u32 %v1896, 7
        %v1898 = vsub.s32 0, %v1897
        %v1899 = vrot.slane %v1891, %v1898
        %v1900 = vsub.f32 %v1874, %v1895
        %v1901 = vsub.f32 %v1875, %v1899
        %v1902 = vmul.f32 %v1900, 1.442695
        %v1903 = vpow.pop %v1902
        %v1904 = vmul.f32 %v1901, 1.442695
        %v1905 = vpow.pop %v1904
        %v1908 = vcombine.low %v1890, %v1891
        %v1910 = vunpack.c.l.s4 1966171168
        %v1911 = vunpack.c.0.s8 %v1910
        %v1912 = vlaneseq
        %v1913 = vshrl.u32 %v1912, 7
        %v1914 = vsub.s32 %v1911, %v1913
        %v1915 = vrot.slane %v1908, %v1914
        %v1917 = vunpack.c.l.s4 1966171168
        %v1918 = vunpack.c.0.s8 %v1917
        %v1919 = vlaneseq
        %v1920 = vshrl.u32 %v1919, 7
        %v1921 = vsub.s32 %v1918, %v1920
        %v1922 = vrot.slane %v1915, %v1921
        %v1924 = vsub.f32 %v639, %v1922
        %v1925 = vmul.f32 %v1924, 1.442695
        %v1926 = vpow.pop %v1925
        %v1927 = vsel %vm1022, %v1903, 0.0
        %v1928 = vrot.slane %v1927, 4
        %v1929 = vadd.f32 %v1927, %v1928
        %v1930 = vrot.slane %v1929, 2
        %v1931 = vadd.f32 %v1929, %v1930
        %v1932 = vrot.slane %v1931, 1
        %v1933 = vadd.f32 %v1931, %v1932
        %v1934 = vsel %vm1022, %v1905, 0.0
        %v1935 = vrot.slane %v1934, 4
        %v1936 = vadd.f32 %v1934, %v1935
        %v1937 = vrot.slane %v1936, 2
        %v1938 = vadd.f32 %v1936, %v1937
        %v1939 = vrot.slane %v1938, 1
        %v1940 = vadd.f32 %v1938, %v1939
        %v1942 = vlaneseq
        %v1943 = vshrl.u32 %v1942, 7
        %v1944 = vsub.s32 0, %v1943
        %v1945 = vrot.slane %v1926, %v1944
        %v1946 = vlaneseq
        %v1947 = vshrl.u32 %v1946, 7
        %v1948 = vsub.s32 1, %v1947
        %v1949 = vrot.slane %v1926, %v1948
        %v1952 = vadd.f32 %v1933, %v1945
        %v1953 = vadd.f32 %v1940, %v1949
        %v1954 = vrcp.pop %v1952
        %v1955 = vmul.f32 1.0, %v1954
        %v1956 = vrcp.pop %v1953
        %v1957 = vmul.f32 1.0, %v1956
        %v1958 = vlaneseq
        %v1959 = vshrl.u32 %v1958, 7
        %v1960 = vsub.s32 0, %v1959
        %v1961 = vrot.slane %v1955, %v1960
        %v1962 = vlaneseq
        %v1963 = vshrl.u32 %v1962, 7
        %v1964 = vsub.s32 0, %v1963
        %v1965 = vrot.slane %v1957, %v1964
        %v1966 = vmul.f32 %v1903, %v1961
        %v1967 = vmul.f32 %v1905, %v1965
        %v1970 = vcombine.low %v1955, %v1957
        %v1972 = vunpack.c.l.s4 1966171168
        %v1973 = vunpack.c.0.s8 %v1972
        %v1974 = vlaneseq
        %v1975 = vshrl.u32 %v1974, 7
        %v1976 = vsub.s32 %v1973, %v1975
        %v1977 = vrot.slane %v1970, %v1976
        %v1979 = vunpack.c.l.s4 1966171168
        %v1980 = vunpack.c.0.s8 %v1979
        %v1981 = vlaneseq
        %v1982 = vshrl.u32 %v1981, 7
        %v1983 = vsub.s32 %v1980, %v1982
        %v1984 = vrot.slane %v1977, %v1983
        %v1986 = vmul.f32 %v1926, %v1984
        %v1987 = vmul.f32 %v1966, %v1822
        %v1988 = vmul.f32 %v1967, %v1824
        %v1989 = vsel %vm1022, %v1987, 0.0
        %v1990 = vrot.slane %v1989, 4
        %v1991 = vadd.f32 %v1989, %v1990
        %v1992 = vrot.slane %v1991, 2
        %v1993 = vadd.f32 %v1991, %v1992
        %v1994 = vrot.slane %v1993, 1
        %v1995 = vadd.f32 %v1993, %v1994
        %v1996 = vsel %vm1022, %v1988, 0.0
        %v1997 = vrot.slane %v1996, 4
        %v1998 = vadd.f32 %v1996, %v1997
        %v1999 = vrot.slane %v1998, 2
        %v2000 = vadd.f32 %v1998, %v1999
        %v2001 = vrot.slane %v2000, 1
        %v2002 = vadd.f32 %v2000, %v2001
        %v2003 = vmul.f32 %v1966, %v1826
        %v2004 = vmul.f32 %v1967, %v1828
        %v2005 = vsel %vm1022, %v2003, 0.0
        %v2006 = vrot.slane %v2005, 4
        %v2007 = vadd.f32 %v2005, %v2006
        %v2008 = vrot.slane %v2007, 2
        %v2009 = vadd.f32 %v2007, %v2008
        %v2010 = vrot.slane %v2009, 1
        %v2011 = vadd.f32 %v2009, %v2010
        %v2012 = vsel %vm1022, %v2004, 0.0
        %v2013 = vrot.slane %v2012, 4
        %v2014 = vadd.f32 %v2012, %v2013
        %v2015 = vrot.slane %v2014, 2
        %v2016 = vadd.f32 %v2014, %v2015
        %v2017 = vrot.slane %v2016, 1
        %v2018 = vadd.f32 %v2016, %v2017
        %v2019 = vmul.f32 %v1966, %v1830
        %v2020 = vmul.f32 %v1967, %v1832
        %v2021 = vsel %vm1022, %v2019, 0.0
        %v2022 = vrot.slane %v2021, 4
        %v2023 = vadd.f32 %v2021, %v2022
        %v2024 = vrot.slane %v2023, 2
        %v2025 = vadd.f32 %v2023, %v2024
        %v2026 = vrot.slane %v2025, 1
        %v2027 = vadd.f32 %v2025, %v2026
        %v2028 = vsel %vm1022, %v2020, 0.0
        %v2029 = vrot.slane %v2028, 4
        %v2030 = vadd.f32 %v2028, %v2029
        %v2031 = vrot.slane %v2030, 2
        %v2032 = vadd.f32 %v2030, %v2031
        %v2033 = vrot.slane %v2032, 1
        %v2034 = vadd.f32 %v2032, %v2033
        %vm2035 = vcmask 1040384
        %v2036 = vsel %vm2035, %v1995, %v2011
        %v2037 = vsel %vm2035, %v2002, %v2018
        %vm2038 = vcmask 1041408
        %v2039 = vsel %vm2038, %v2036, %v2027
        %v2040 = vsel %vm2038, %v2037, %v2034
        %v2042 = vlaneseq
        %v2043 = vshrl.u32 %v2042, 7
        %v2044 = vsub.s32 0, %v2043
        %v2045 = vrot.slane %v1986, %v2044
        %v2046 = vlaneseq
        %v2047 = vshrl.u32 %v2046, 7
        %v2048 = vsub.s32 1, %v2047
        %v2049 = vrot.slane %v1986, %v2048
        %v2053 = vcombine.high %v638, %v638
        %v2055 = vmul.f32 %v2045, %v638
        %v2056 = vmul.f32 %v2049, %v2053
        %v2057 = vadd.f32 %v2039, %v2055
        %v2058 = vadd.f32 %v2040, %v2056
        %v2061 = vcombine.low %v2057, %v2058
        %2063 = vst [vmem:[%s609] sm:$0x77] %v2061
        %v2066 = vcombine.low %v1966, %v1967
        %2068 = vst [vmem:[%s614] sm:$0xff] %v2066
        %v2069 = vlaneseq
        %vm2070 = vcmp.ge.s32.totalorder %v2069, 0
        %vm2071 = vcmp.lt.s32.totalorder %v2069, 256
        %vm2072 = vmand %vm2070, %vm2071
        %2073 = vst.msk [vmem:[%s618] sm:$0x3] %vm2072, %v1986
        %v2080 = vcombine.low %v1822, %v1824
        %v2081 = vcombine.low %v1826, %v1828
        %v2082 = vcombine.low %v1830, %v1832
        %2086 = vst [vmem:[%s623] sm:$0xff] %v2080
        %2087 = vst [vmem:[%s623 + $0x8] sm:$0xff] %v2081
        %2088 = vst [vmem:[%s623 + $0x10] sm:$0xff] %v2082
        %2089 = vst.msk [vmem:[%s627] sm:$0xf] %vm1610, %v1596
        %2091 = vrot.lane.b32.xlu0 %v1603, 125
        %v2092 = vpop.permute.xlu0 %2091
        %vm2094 = vcmask 257024
        %2095 = vst.msk [vmem:[%s631] sm:$0xf] %vm2094, %v2092
        %2096 = vrot.lane.b32.xlu0 %v1609, 125
        %v2097 = vpop.permute.xlu0 %2096
        %vm2099 = vcmask 3072
        %2100 = vst.msk [vmem:[%s635] sm:$0xf] %vm2099, %v2097
        %vm2101 = vcmask 16384
        %2102 = vst.msk [vmem:[%s599] sm:$0x1] %vm2101, %v1619
        %p2103 = scmp.lt.s32.totalorder %s33, 1
        %s2104 = scalar_select %p2103, %s33, 1
        %s2105 = smul.addr %s2104, 2
        %s2106 = smul.addr %s2105, 4
        %s2107 = scalar_lea.vmem %s10, %s2106
        %p2108 = scmp.lt.s32.totalorder %s33, 1
        %s2109 = scalar_select %p2108, %s33, 1
        %s2110 = smul.addr %s2109, 2
        %s2111 = smul.addr %s2110, 4
        %s2112 = scalar_lea.vmem %s11, %s2111
        %p2113 = scmp.lt.s32.totalorder %s33, 1
        %s2114 = scalar_select %p2113, %s33, 1
        %s2115 = smul.addr %s2114, 2
        %s2116 = scalar_lea.vmem %s12, %s2115
        %p2117 = scmp.lt.s32.totalorder %s33, 1
        %s2118 = scalar_select %p2117, %s33, 1
        %s2119 = smul.addr %s2118, 6
        %s2120 = smul.addr %s2119, 4
        %s2121 = scalar_lea.vmem %s13, %s2120
        %p2122 = scmp.lt.s32.totalorder %s33, 1
        %s2123 = scalar_select %p2122, %s33, 1
        %s2124 = smul.addr %s2123, 4
        %s2125 = scalar_lea.vmem %s14, %s2124
        %p2126 = scmp.lt.s32.totalorder %s33, 1
        %s2127 = scalar_select %p2126, %s33, 1
        %s2128 = smul.addr %s2127, 4
        %s2129 = scalar_lea.vmem %s15, %s2128
        %p2130 = scmp.lt.s32.totalorder %s33, 1
        %s2131 = scalar_select %p2130, %s33, 1
        %s2132 = smul.addr %s2131, 4
        %s2133 = scalar_lea.vmem %s16, %s2132
        %s2134 = sand.u32 %s438, 1
        %s2135 = scalar_lea.sflag [#allocation4], %s2134
        %s2136 = sand.u32 %s438, 1
        %s2137 = scalar_lea.vmem [#allocation5], %s2136
        // Predicated region
        $region65: #{loci_forward.1} parent=59 // pred_check
          %p2138 = pneg %p266
        $region66: #{loci_forward.1} parent=59 // pred_check_branch
          %2140 = sbr.rel (%p2138) target = $region68
        $region67: #{loci_forward.1} parent=59 // pred_region
          _
        $region68: #{loci_forward.1} parent=59 // pred_fallthru
          _
        // Predicated region
        $region69: #{loci_forward.1} parent=59 // pred_check
          %p2141 = pneg %p292
        $region70: #{loci_forward.1} parent=59 // pred_check_branch
          %2143 = sbr.rel (%p2141) target = $region72
        $region71: #{loci_forward.1} parent=59 // pred_region
          _
        $region72: #{loci_forward.1} parent=59 // pred_fallthru
          _
        // Predicated region
        $region73: #{loci_forward.1} parent=59 // pred_check
          %p2144 = pneg %p318
        $region74: #{loci_forward.1} parent=59 // pred_check_branch
          %2146 = sbr.rel (%p2144) target = $region76
        $region75: #{loci_forward.1} parent=59 // pred_region
          _
        $region76: #{loci_forward.1} parent=59 // pred_fallthru
          _
        // Predicated region
        $region77: #{loci_forward.1} parent=59 // pred_check
          %p2147 = pneg %p344
        $region78: #{loci_forward.1} parent=59 // pred_check_branch
          %2149 = sbr.rel (%p2147) target = $region80
        $region79: #{loci_forward.1} parent=59 // pred_region
          _
        $region80: #{loci_forward.1} parent=59 // pred_fallthru
          _
        // Predicated region
        $region81: #{loci_forward.1} parent=59 // pred_check
          %p2150 = pneg %p370
        $region82: #{loci_forward.1} parent=59 // pred_check_branch
          %2152 = sbr.rel (%p2150) target = $region84
        $region83: #{loci_forward.1} parent=59 // pred_region
          _
        $region84: #{loci_forward.1} parent=59 // pred_fallthru
          _
        // Predicated region
        $region85: #{loci_forward.1} parent=59 // pred_check
          %p2153 = pneg %p396
        $region86: #{loci_forward.1} parent=59 // pred_check_branch
          %2155 = sbr.rel (%p2153) target = $region88
        $region87: #{loci_forward.1} parent=59 // pred_region
          _
        $region88: #{loci_forward.1} parent=59 // pred_fallthru
          _
        // Predicated region
        $region89: #{loci_forward.1} parent=59 // pred_check
          %p2156 = pneg %p422
        $region90: #{loci_forward.1} parent=59 // pred_check_branch
          %2158 = sbr.rel (%p2156) target = $region92
        $region91: #{loci_forward.1} parent=59 // pred_region
          _
        $region92: #{loci_forward.1} parent=59 // pred_fallthru
          _
        // Predicated region
        $region93: #{loci_forward.1} parent=59 // pred_check
          %p2159 = pneg %p448
        $region94: #{loci_forward.1} parent=59 // pred_check_branch
          %2161 = sbr.rel (%p2159) target = $region96
        $region95: #{loci_forward.1} parent=59 // pred_region
          %s2163 = ssub.s32 16, 16
          %2164 = vsyncadd %s2135, %s2163
          %s2165 = smul.addr %s33, 16
          %s2166 = scalar_lea.hbm %s17, %s2165
          %s2168 = sshll.u32 %s2137, 4
          %s2169 = int_to_ptr.vmem [resolvable:$true] %s2168
          %2171 = dma.vmem_to_hbm [thread:$0]  %s2169, 16, %s2166, %s2135
        $region96: #{loci_forward.1} parent=59 // pred_fallthru
          _
      $region60: #{loci_forward.1} parent=5 // pred_fallthru
        _
      %p2172 = scmp.le.s32.totalorder 2, %s28
      // Predicated region
      $region97: #{loci_forward.1} parent=5 // pred_check
        %p2173 = pneg %p2172
      $region98: #{loci_forward.1} parent=5 // pred_check_branch
        %2175 = sbr.rel (%p2173) target = $region100
      $region99: #{loci_forward.1} parent=5 // pred_region
        %s2176 = ssub.s32 %s28, 2
        // Predicated region
        $region101: #{loci_forward.1} parent=99 // pred_check
          %p2177 = pneg %p272
        $region102: #{loci_forward.1} parent=99 // pred_check_branch
          %2179 = sbr.rel (%p2177) target = $region104
        $region103: #{loci_forward.1} parent=99 // pred_region
          %p2180 = scmp.lt.s32.totalorder %s34, 1
          %s2181 = scalar_select %p2180, %s34, 1
          %s2182 = smul.addr %s2181, 2
          %s2183 = smul.addr %s2182, 4
          %s2184 = scalar_lea.vmem %s10, %s2183
        $region104: #{loci_forward.1} parent=99 // pred_fallthru
          _
        // Predicated region
        $region105: #{loci_forward.1} parent=99 // pred_check
          %p2185 = pneg %p298
        $region106: #{loci_forward.1} parent=99 // pred_check_branch
          %2187 = sbr.rel (%p2185) target = $region108
        $region107: #{loci_forward.1} parent=99 // pred_region
          %p2188 = scmp.lt.s32.totalorder %s34, 1
          %s2189 = scalar_select %p2188, %s34, 1
          %s2190 = smul.addr %s2189, 2
          %s2191 = smul.addr %s2190, 4
          %s2192 = scalar_lea.vmem %s11, %s2191
        $region108: #{loci_forward.1} parent=99 // pred_fallthru
          _
        // Predicated region
        $region109: #{loci_forward.1} parent=99 // pred_check
          %p2193 = pneg %p324
        $region110: #{loci_forward.1} parent=99 // pred_check_branch
          %2195 = sbr.rel (%p2193) target = $region112
        $region111: #{loci_forward.1} parent=99 // pred_region
          %p2196 = scmp.lt.s32.totalorder %s34, 1
          %s2197 = scalar_select %p2196, %s34, 1
          %s2198 = smul.addr %s2197, 2
          %s2199 = scalar_lea.vmem %s12, %s2198
        $region112: #{loci_forward.1} parent=99 // pred_fallthru
          _
        // Predicated region
        $region113: #{loci_forward.1} parent=99 // pred_check
          %p2200 = pneg %p350
        $region114: #{loci_forward.1} parent=99 // pred_check_branch
          %2202 = sbr.rel (%p2200) target = $region116
        $region115: #{loci_forward.1} parent=99 // pred_region
          %p2203 = scmp.lt.s32.totalorder %s34, 1
          %s2204 = scalar_select %p2203, %s34, 1
          %s2205 = smul.addr %s2204, 6
          %s2206 = smul.addr %s2205, 4
          %s2207 = scalar_lea.vmem %s13, %s2206
        $region116: #{loci_forward.1} parent=99 // pred_fallthru
          _
        // Predicated region
        $region117: #{loci_forward.1} parent=99 // pred_check
          %p2208 = pneg %p376
        $region118: #{loci_forward.1} parent=99 // pred_check_branch
          %2210 = sbr.rel (%p2208) target = $region120
        $region119: #{loci_forward.1} parent=99 // pred_region
          %p2211 = scmp.lt.s32.totalorder %s34, 1
          %s2212 = scalar_select %p2211, %s34, 1
          %s2213 = smul.addr %s2212, 4
          %s2214 = scalar_lea.vmem %s14, %s2213
        $region120: #{loci_forward.1} parent=99 // pred_fallthru
          _
        // Predicated region
        $region121: #{loci_forward.1} parent=99 // pred_check
          %p2215 = pneg %p402
        $region122: #{loci_forward.1} parent=99 // pred_check_branch
          %2217 = sbr.rel (%p2215) target = $region124
        $region123: #{loci_forward.1} parent=99 // pred_region
          %p2218 = scmp.lt.s32.totalorder %s34, 1
          %s2219 = scalar_select %p2218, %s34, 1
          %s2220 = smul.addr %s2219, 4
          %s2221 = scalar_lea.vmem %s15, %s2220
        $region124: #{loci_forward.1} parent=99 // pred_fallthru
          _
        // Predicated region
        $region125: #{loci_forward.1} parent=99 // pred_check
          %p2222 = pneg %p428
        $region126: #{loci_forward.1} parent=99 // pred_check_branch
          %2224 = sbr.rel (%p2222) target = $region128
        $region127: #{loci_forward.1} parent=99 // pred_region
          %p2225 = scmp.lt.s32.totalorder %s34, 1
          %s2226 = scalar_select %p2225, %s34, 1
          %s2227 = smul.addr %s2226, 4
          %s2228 = scalar_lea.vmem %s16, %s2227
        $region128: #{loci_forward.1} parent=99 // pred_fallthru
          _
        // Predicated region
        $region129: #{loci_forward.1} parent=99 // pred_check
          %p2229 = pneg %p454
        $region130: #{loci_forward.1} parent=99 // pred_check_branch
          %2231 = sbr.rel (%p2229) target = $region132
        $region131: #{loci_forward.1} parent=99 // pred_region
          %s2232 = sand.u32 %s439, 1
          %s2233 = scalar_lea.sflag [#allocation4], %s2232
          %s2234 = sand.u32 %s439, 1
          %s2235 = scalar_lea.vmem [#allocation5], %s2234
          %2236 = dma.done %s2233, 16
        $region132: #{loci_forward.1} parent=99 // pred_fallthru
          _
      $region100: #{loci_forward.1} parent=5 // pred_fallthru
        _
    $region6: #{loci_forward.1} parent=1 // loop_footer
      %s32 = sadd.s32 1, %s28
    $region7: #{loci_forward.1} parent=1 // loop_footer_branch
      %27 = sbr.rel target = $region3
    $region8: #{loci_forward.1} parent=1 // loop_exit
      _
    %2237 = vsyncpa [#allocation3], 1
    %s2238 = scalar_lea.sflag [#allocation3], 1
    %2239 = vsyncpa %s2238, 1
    %2240 = vsyncpa [#allocation4], 1
    %s2241 = scalar_lea.sflag [#allocation4], 1
    %2242 = vsyncpa %s2241, 1

</llo_original>
